<compile_context>
chip_gen: v7x
topology: tpu7x:2x2x1
jax: 0.10.0
libtpu: 0.0.40
codegen_flags: <defaults>
</compile_context>

<pallas_src>
import functools

import jax
import jax.numpy as jnp
from jax.experimental import pallas as pl
from jax.experimental.pallas import tpu as pltpu


def _round_up(x, m):
    return (x + m - 1) // m * m


# ----------------------------------------------------------------- tiled GEMM
def _linear_bias_kernel(a_ref, b_ref, bias_ref, o_ref):
    """Single-K-step fast path: no scratch accumulator, direct store."""
    o_ref[...] = (jnp.dot(a_ref[...], b_ref[...],
                          preferred_element_type=jnp.float32)
                  + bias_ref[...]).astype(o_ref.dtype)


def _linear_bias_acc_kernel(a_ref, b_ref, bias_ref, o_ref, acc_ref):
    """Multi-K-step path: f32 VMEM accumulator with init/finalize."""
    @pl.when(pl.program_id(2) == 0)
    def _():
        acc_ref[...] = jnp.zeros_like(acc_ref)

    acc_ref[...] += jnp.dot(a_ref[...], b_ref[...],
                            preferred_element_type=jnp.float32)

    @pl.when(pl.program_id(2) == pl.num_programs(2) - 1)
    def _():
        o_ref[...] = (acc_ref[...] + bias_ref[...]).astype(o_ref.dtype)


def linear_bias(a, w, bias, *, out_dtype=jnp.float32, tm=512, tn=512, tk=2048):
    """out = a @ w + bias.  bf16 MXU operands, f32 accumulation/epilogue.

    Tiles collapse to the full (unpadded) dim when it fits; M/N that don't
    divide the tile rely on Pallas-masked edge blocks (no pad + slice round
    trips).  Only a K overhang is zero-padded (K garbage would corrupt valid
    outputs).
    """
    M, K = a.shape
    Kw, N = w.shape
    assert K == Kw
    a = a.astype(jnp.bfloat16)
    w = w.astype(jnp.bfloat16)
    bias = bias.reshape(1, N).astype(jnp.float32)

    tm_ = M if M <= tm else tm
    tn_ = N if N <= tn else tn
    tk_ = K if K <= tk else tk

    Kp = _round_up(K, tk_)
    if Kp != K:
        a = jnp.pad(a, ((0, 0), (0, Kp - K)))
        w = jnp.pad(w, ((0, Kp - K), (0, 0)))
    nk = Kp // tk_
    gm, gn = pl.cdiv(M, tm_), pl.cdiv(N, tn_)

    if nk == 1:
        # No-scratch fast path: whole reduction in one MXU pass per tile.
        return pl.pallas_call(
            _linear_bias_kernel,
            grid=(gm, gn),
            in_specs=[
                pl.BlockSpec((tm_, tk_), lambda i, j: (i, 0)),
                pl.BlockSpec((tk_, tn_), lambda i, j: (0, j)),
                pl.BlockSpec((1, tn_), lambda i, j: (0, j)),
            ],
            out_specs=pl.BlockSpec((tm_, tn_), lambda i, j: (i, j)),
            out_shape=jax.ShapeDtypeStruct((M, N), out_dtype),
            compiler_params=pltpu.CompilerParams(
                dimension_semantics=("parallel", "parallel")),
        )(a, w, bias)

    return pl.pallas_call(
        _linear_bias_acc_kernel,
        grid=(gm, gn, nk),
        in_specs=[
            pl.BlockSpec((tm_, tk_), lambda i, j, k: (i, k)),
            pl.BlockSpec((tk_, tn_), lambda i, j, k: (k, j)),
            pl.BlockSpec((1, tn_), lambda i, j, k: (0, j)),
        ],
        out_specs=pl.BlockSpec((tm_, tn_), lambda i, j, k: (i, j)),
        out_shape=jax.ShapeDtypeStruct((M, N), out_dtype),
        scratch_shapes=[pltpu.VMEM((tm_, tn_), jnp.float32)],
        compiler_params=pltpu.CompilerParams(
            dimension_semantics=("parallel", "parallel", "arbitrary")),
    )(a, w, bias)


# ----------------------- fused (q-proj + single-query attention + c_proj) ----
def _attn_pool_kernel(x0_ref, kv_ref, wq_ref, bq_ref, wc_ref, bc_ref, o_ref,
                      *, num_heads, head_dim):
    E = num_heads * head_dim

    # q projection of the mean token; softmax scale pre-folded into wq/bq.
    x0 = x0_ref[0]                                              # (1, E) bf16
    q = (jnp.dot(x0, wq_ref[...], preferred_element_type=jnp.float32)
         + bq_ref[...]).astype(jnp.bfloat16)                    # (1, E)

    kv = kv_ref[0]                                              # (L, 2E) bf16

    head_outs = []
    for h in range(num_heads):                                  # unrolled
        lo = h * head_dim
        q_h = q[:, lo:lo + head_dim]                            # (1, Dh)
        k_h = kv[:, lo:lo + head_dim]                           # (L, Dh)
        v_h = kv[:, E + lo:E + lo + head_dim]                   # (L, Dh)
        s = jax.lax.dot_general(q_h, k_h, (((1,), (1,)), ((), ())),
                                preferred_element_type=jnp.float32)  # (1, L)
        s = s - jnp.max(s, axis=-1, keepdims=True)
        p = jnp.exp(s)
        p = p * pl.reciprocal(jnp.sum(p, axis=-1, keepdims=True),
                              approx=True)                      # EUP slot
        head_outs.append(jnp.dot(p.astype(jnp.bfloat16), v_h,
                                 preferred_element_type=jnp.float32))  # (1, Dh)

    attn = jnp.concatenate(head_outs, axis=-1).astype(jnp.bfloat16)    # (1, E)
    out = (jnp.dot(attn, wc_ref[...], preferred_element_type=jnp.float32)
           + bc_ref[...])                                              # (1, O)
    o_ref[0] = out.astype(o_ref.dtype)


def fused_pool_attention(x0, kv, wq, bq, wc, bc, *, num_heads, head_dim):
    """x0: (B, 1, E) bf16, kv: (B, L, 2E) bf16 -> (B, O) float32."""
    B = x0.shape[0]
    L = kv.shape[1]
    E = num_heads * head_dim
    O = wc.shape[1]
    kernel = functools.partial(_attn_pool_kernel,
                               num_heads=num_heads, head_dim=head_dim)
    out = pl.pallas_call(
        kernel,
        grid=(B,),
        in_specs=[
            pl.BlockSpec((1, 1, E), lambda b: (b, 0, 0)),       # mean-token row
            pl.BlockSpec((1, L, 2 * E), lambda b: (b, 0, 0)),   # K|V of batch b
            pl.BlockSpec((E, E), lambda b: (0, 0)),             # Wq (resident)
            pl.BlockSpec((1, E), lambda b: (0, 0)),             # bq
            pl.BlockSpec((E, O), lambda b: (0, 0)),             # Wc (resident)
            pl.BlockSpec((1, O), lambda b: (0, 0)),             # bc
        ],
        out_specs=pl.BlockSpec((1, 1, O), lambda b: (b, 0, 0)),
        out_shape=jax.ShapeDtypeStruct((B, 1, O), jnp.float32),
        compiler_params=pltpu.CompilerParams(
            dimension_semantics=("parallel",)),
    )(x0, kv, wq, bq, wc, bc)
    return out.reshape(B, O)


# ----------------------------------------------------------- weight prep / fwd
def prepare_params(params, num_heads):
    """One-time (outside jit): transpose, concat K|V, fold softmax scale,
    cast matmul operands to bf16."""
    E = params["q_w"].shape[1]
    scale = float(E // num_heads) ** -0.5
    kv_w = jnp.concatenate([params["k_w"].T, params["v_w"].T], axis=1)
    kv_b = jnp.concatenate([params["k_b"], params["v_b"]], axis=0)
    return {
        "pos_emb": params["pos_emb"].astype(jnp.float32),
        "kv_w": kv_w.astype(jnp.bfloat16),                        # (E, 2E)
        "kv_b": kv_b.reshape(1, -1).astype(jnp.float32),          # (1, 2E)
        "q_w": (params["q_w"].T * scale).astype(jnp.bfloat16),    # (E, E)
        "q_b": (params["q_b"] * scale).reshape(1, -1).astype(jnp.float32),
        "c_w": params["c_w"].T.astype(jnp.bfloat16),              # (E, O)
        "c_b": params["c_b"].reshape(1, -1).astype(jnp.float32),  # (1, O)
    }


def attention_pool2d(x_nchw, prepped, num_heads):
    """AttentionPool2d.forward: x (B, C, H, W) -> (B, output_dim)."""
    B, C, H, W = x_nchw.shape
    E = C
    assert E % num_heads == 0
    head_dim = E // num_heads
    L = H * W + 1

    # Batch-major tokens: (B, L, E) = [mean | spatial] + positional embedding.
    x = x_nchw.reshape(B, C, H * W).transpose(0, 2, 1)              # (B, HW, E)
    x = jnp.concatenate([x.mean(axis=1, keepdims=True), x], axis=1)  # (B, L, E)
    x = (x + prepped["pos_emb"][None, :, :]).astype(jnp.bfloat16)

    # Fused K/V projection (N = 2E), bf16 output (largest intermediate).
    kv = linear_bias(x.reshape(B * L, E), prepped["kv_w"], prepped["kv_b"],
                     out_dtype=jnp.bfloat16).reshape(B, L, 2 * E)

    # Only query 0 (the mean token) is consumed by the module; its projection,
    # the single-query attention and c_proj are fused into one per-batch kernel.
    x0 = x[:, 0:1, :]                                                # (B, 1, E)
    return fused_pool_attention(x0, kv, prepped["q_w"], prepped["q_b"],
                                prepped["c_w"], prepped["c_b"],
                                num_heads=num_heads, head_dim=head_dim)


# ---------------------------------------------------------- pure-JAX reference
def attention_pool2d_reference(x_nchw, params, num_heads):
    B, C, H, W = x_nchw.shape
    E = C
    hd = E // num_heads
    scale = float(hd) ** -0.5
    x = x_nchw.reshape(B, C, H * W).transpose(2, 0, 1)
    x = jnp.concatenate([x.mean(axis=0, keepdims=True), x], axis=0)
    x = x + params["pos_emb"][:, None, :]
    L = x.shape[0]
    q = (x @ params["q_w"].T + params["q_b"]) * scale
    k = x @ params["k_w"].T + params["k_b"]
    v = x @ params["v_w"].T + params["v_b"]

    def sh(t):
        return t.reshape(L, B, num_heads, hd).transpose(1, 2, 0, 3)  # (B,H,L,d)

    q, k, v = sh(q), sh(k), sh(v)
    s = jnp.einsum("bhqd,bhkd->bhqk", q, k)
    p = jax.nn.softmax(s, axis=-1)
    o = jnp.einsum("bhqk,bhkd->bhqd", p, v)
    o = o.transpose(2, 0, 1, 3).reshape(L, B, E)
    out = o @ params["c_w"].T + params["c_b"]
    return out[0]


# ---------------------------------------------------------------------------
if __name__ == "__main__":
    B = 2
    embed_dim = 64
    num_heads = 4
    spacial_dim = 8       # HW = 64, L = 65
    output_dim = 32

    key = jax.random.PRNGKey(0)
    ks = jax.random.split(key, 10)
    params = {
        "pos_emb": jax.random.normal(ks[0], (spacial_dim ** 2 + 1, embed_dim),
                                     jnp.float32) / embed_dim ** 0.5,
        "q_w": 0.05 * jax.random.normal(ks[1], (embed_dim, embed_dim), jnp.float32),
        "q_b": 0.05 * jax.random.normal(ks[2], (embed_dim,), jnp.float32),
        "k_w": 0.05 * jax.random.normal(ks[3], (embed_dim, embed_dim), jnp.float32),
        "k_b": 0.05 * jax.random.normal(ks[4], (embed_dim,), jnp.float32),
        "v_w": 0.05 * jax.random.normal(ks[5], (embed_dim, embed_dim), jnp.float32),
        "v_b": 0.05 * jax.random.normal(ks[6], (embed_dim,), jnp.float32),
        "c_w": 0.05 * jax.random.normal(ks[7], (output_dim, embed_dim), jnp.float32),
        "c_b": 0.05 * jax.random.normal(ks[8], (output_dim,), jnp.float32),
    }
    x = jax.random.normal(ks[9], (B, embed_dim, spacial_dim, spacial_dim),
                          jnp.float32)

    prepped = prepare_params(params, num_heads)   # one-time weight prep (outside jit)
    fwd = jax.jit(attention_pool2d, static_argnums=2)
    out = jax.block_until_ready(fwd(x, prepped, num_heads))
    assert out.shape == (B, output_dim), out.shape
    assert bool(jnp.all(jnp.isfinite(out)))

    ref = jax.block_until_ready(attention_pool2d_reference(x, params, num_heads))
    max_err = float(jnp.max(jnp.abs(out - ref)))
    assert max_err < 5e-2, f"max abs err vs f32 reference: {max_err}"

    print("KERNEL_OK")
</pallas_src>

<mosaic_0001>
module attributes {stable_mosaic.version = 11 : i64} {
  func.func @_linear_bias_kernel(%arg0: i32, %arg1: i32, %arg2: memref<130x64xbf16, #tpu.memory_space<vmem>>, %arg3: memref<64x128xbf16, #tpu.memory_space<vmem>>, %arg4: memref<1x128xf32, #tpu.memory_space<vmem>>, %arg5: memref<130x128xbf16, #tpu.memory_space<vmem>>) attributes {dimension_semantics = [#tpu.dimension_semantics<parallel>, #tpu.dimension_semantics<parallel>], iteration_bounds = array<i64: 1, 1>, scalar_prefetch = 0 : i64, scratch_operands = 0 : i64, tpu.core_type = #tpu.core_type<tc>, window_params = [{transform_indices = @transform_0, window_bounds = array<i64: 130, 64>}, {transform_indices = @transform_1, window_bounds = array<i64: 64, 128>}, {transform_indices = @transform_2, window_bounds = array<i64: 1, 128>}, {transform_indices = @transform_3, window_bounds = array<i64: 130, 128>}]} {
    %c0 = arith.constant 0 : index
    %c0_0 = arith.constant 0 : index
    %0 = vector.load %arg2[%c0, %c0_0] : memref<130x64xbf16, #tpu.memory_space<vmem>>, vector<130x64xbf16>
    %c0_1 = arith.constant 0 : index
    %c0_2 = arith.constant 0 : index
    %1 = vector.load %arg3[%c0_1, %c0_2] : memref<64x128xbf16, #tpu.memory_space<vmem>>, vector<64x128xbf16>
    %cst = arith.constant dense<0.000000e+00> : vector<130x128xf32>
    %2 = tpu.matmul %0, %1, %cst {dimension_numbers = #tpu.dot_dimension_numbers<[1], [0], [0], [1], [0, 0, 1, 1], [], []>} : vector<130x64xbf16>, vector<64x128xbf16>, vector<130x128xf32> -> vector<130x128xf32>
    %c0_3 = arith.constant 0 : index
    %c0_4 = arith.constant 0 : index
    %3 = vector.load %arg4[%c0_3, %c0_4] : memref<1x128xf32, #tpu.memory_space<vmem>>, vector<1x128xf32>
    %4 = vector.broadcast %3 : vector<1x128xf32> to vector<130x128xf32>
    %5 = arith.addf %2, %4 : vector<130x128xf32>
    %6 = arith.truncf %5 : vector<130x128xf32> to vector<130x128xbf16>
    %c0_5 = arith.constant 0 : index
    %c0_6 = arith.constant 0 : index
    %7 = vector.load %arg5[%c0_5, %c0_6] : memref<130x128xbf16, #tpu.memory_space<vmem>>, vector<130x128xbf16>
    tpu.vector_store %arg5[%c0_5, %c0_6], %6 {strides = array<i32>} : memref<130x128xbf16, #tpu.memory_space<vmem>>, vector<130x128xbf16>,
    return
  }
  func.func @transform_0(%arg0: i32, %arg1: i32) -> (i32, i32) {
    %c0_i32 = arith.constant 0 : i32
    %c0_i32_0 = arith.constant 0 : i32
    return %arg0, %c0_i32 : i32, i32
  }
  func.func @transform_1(%arg0: i32, %arg1: i32) -> (i32, i32) {
    %c0_i32 = arith.constant 0 : i32
    %c0_i32_0 = arith.constant 0 : i32
    return %c0_i32, %arg1 : i32, i32
  }
  func.func @transform_2(%arg0: i32, %arg1: i32) -> (i32, i32) {
    %c0_i32 = arith.constant 0 : i32
    %c0_i32_0 = arith.constant 0 : i32
    return %c0_i32, %arg1 : i32, i32
  }
  func.func @transform_3(%arg0: i32, %arg1: i32) -> (i32, i32) {
    %c0_i32 = arith.constant 0 : i32
    return %arg0, %arg1 : i32, i32
  }
}

module attributes {stable_mosaic.version = 11 : i64} {
  func.func @_attn_pool_kernel(%arg0: i32, %arg1: memref<1x1x64xbf16, #tpu.memory_space<vmem>>, %arg2: memref<1x65x128xbf16, #tpu.memory_space<vmem>>, %arg3: memref<64x64xbf16, #tpu.memory_space<vmem>>, %arg4: memref<1x64xf32, #tpu.memory_space<vmem>>, %arg5: memref<64x32xbf16, #tpu.memory_space<vmem>>, %arg6: memref<1x32xf32, #tpu.memory_space<vmem>>, %arg7: memref<1x1x32xf32, #tpu.memory_space<vmem>>) attributes {dimension_semantics = [#tpu.dimension_semantics<parallel>], iteration_bounds = array<i64: 2>, scalar_prefetch = 0 : i64, scratch_operands = 0 : i64, tpu.core_type = #tpu.core_type<tc>, window_params = [{transform_indices = @transform_0, window_bounds = array<i64: 1, 1, 64>}, {transform_indices = @transform_1, window_bounds = array<i64: 1, 65, 128>}, {pipeline_mode = #tpu.pipeline_mode<synchronous>, transform_indices = @transform_2, window_bounds = array<i64: 64, 64>}, {pipeline_mode = #tpu.pipeline_mode<synchronous>, transform_indices = @transform_3, window_bounds = array<i64: 1, 64>}, {pipeline_mode = #tpu.pipeline_mode<synchronous>, transform_indices = @transform_4, window_bounds = array<i64: 64, 32>}, {pipeline_mode = #tpu.pipeline_mode<synchronous>, transform_indices = @transform_5, window_bounds = array<i64: 1, 32>}, {transform_indices = @transform_6, window_bounds = array<i64: 1, 1, 32>}]} {
    %c0 = arith.constant 0 : index
    %c0_0 = arith.constant 0 : index
    %c0_1 = arith.constant 0 : index
    %0 = vector.load %arg1[%c0, %c0_0, %c0_1] : memref<1x1x64xbf16, #tpu.memory_space<vmem>>, vector<1x1x64xbf16>
    %1 = vector.shape_cast %0 : vector<1x1x64xbf16> to vector<1x64xbf16>
    %c0_2 = arith.constant 0 : index
    %c0_3 = arith.constant 0 : index
    %2 = vector.load %arg3[%c0_2, %c0_3] : memref<64x64xbf16, #tpu.memory_space<vmem>>, vector<64x64xbf16>
    %cst = arith.constant dense<0.000000e+00> : vector<1x64xf32>
    %3 = tpu.matmul %1, %2, %cst {dimension_numbers = #tpu.dot_dimension_numbers<[1], [0], [0], [1], [0, 0, 1, 1], [], []>} : vector<1x64xbf16>, vector<64x64xbf16>, vector<1x64xf32> -> vector<1x64xf32>
    %c0_4 = arith.constant 0 : index
    %c0_5 = arith.constant 0 : index
    %4 = vector.load %arg4[%c0_4, %c0_5] : memref<1x64xf32, #tpu.memory_space<vmem>>, vector<1x64xf32>
    %5 = arith.addf %3, %4 : vector<1x64xf32>
    %6 = arith.truncf %5 : vector<1x64xf32> to vector<1x64xbf16>
    %c0_6 = arith.constant 0 : index
    %c0_7 = arith.constant 0 : index
    %c0_8 = arith.constant 0 : index
    %7 = vector.load %arg2[%c0_6, %c0_7, %c0_8] : memref<1x65x128xbf16, #tpu.memory_space<vmem>>, vector<1x65x128xbf16>
    %8 = vector.shape_cast %7 : vector<1x65x128xbf16> to vector<65x128xbf16>
    %9 = vector.extract_strided_slice %6 {offsets = [0, 0], sizes = [1, 16], strides = [1, 1]} : vector<1x64xbf16> to vector<1x16xbf16>
    %10 = vector.extract_strided_slice %8 {offsets = [0, 0], sizes = [65, 16], strides = [1, 1]} : vector<65x128xbf16> to vector<65x16xbf16>
    %11 = vector.extract_strided_slice %8 {offsets = [0, 64], sizes = [65, 16], strides = [1, 1]} : vector<65x128xbf16> to vector<65x16xbf16>
    %cst_9 = arith.constant dense<0.000000e+00> : vector<1x65xf32>
    %12 = tpu.matmul %9, %10, %cst_9 {dimension_numbers = #tpu.dot_dimension_numbers<[1], [1], [0], [0], [0, 0, 1, 0], [], []>} : vector<1x16xbf16>, vector<65x16xbf16>, vector<1x65xf32> -> vector<1x65xf32>
    %cst_10 = arith.constant dense<0xFF800000> : vector<1xf32>
    %13 = vector.multi_reduction <maximumf>, %12, %cst_10 [1] : vector<1x65xf32> to vector<1xf32>
    %14 = vector.shape_cast %13 : vector<1xf32> to vector<1x1xf32>
    %15 = vector.broadcast %14 : vector<1x1xf32> to vector<1x65xf32>
    %16 = arith.subf %12, %15 : vector<1x65xf32>
    %17 = math.exp %16 : vector<1x65xf32>
    %cst_11 = arith.constant dense<0.000000e+00> : vector<1xf32>
    %18 = vector.multi_reduction <add>, %17, %cst_11 [1] : vector<1x65xf32> to vector<1xf32>
    %19 = vector.shape_cast %18 : vector<1xf32> to vector<1x1xf32>
    %20 = tpu.reciprocal %19 {approx = true} : vector<1x1xf32> -> vector<1x1xf32>
    %21 = vector.broadcast %20 : vector<1x1xf32> to vector<1x65xf32>
    %22 = arith.mulf %17, %21 : vector<1x65xf32>
    %23 = arith.truncf %22 : vector<1x65xf32> to vector<1x65xbf16>
    %cst_12 = arith.constant dense<0.000000e+00> : vector<1x16xf32>
    %24 = tpu.matmul %23, %11, %cst_12 {dimension_numbers = #tpu.dot_dimension_numbers<[1], [0], [0], [1], [0, 0, 1, 1], [], []>} : vector<1x65xbf16>, vector<65x16xbf16>, vector<1x16xf32> -> vector<1x16xf32>
    %25 = vector.extract_strided_slice %6 {offsets = [0, 16], sizes = [1, 16], strides = [1, 1]} : vector<1x64xbf16> to vector<1x16xbf16>
    %26 = vector.extract_strided_slice %8 {offsets = [0, 16], sizes = [65, 16], strides = [1, 1]} : vector<65x128xbf16> to vector<65x16xbf16>
    %27 = vector.extract_strided_slice %8 {offsets = [0, 80], sizes = [65, 16], strides = [1, 1]} : vector<65x128xbf16> to vector<65x16xbf16>
    %cst_13 = arith.constant dense<0.000000e+00> : vector<1x65xf32>
    %28 = tpu.matmul %25, %26, %cst_13 {dimension_numbers = #tpu.dot_dimension_numbers<[1], [1], [0], [0], [0, 0, 1, 0], [], []>} : vector<1x16xbf16>, vector<65x16xbf16>, vector<1x65xf32> -> vector<1x65xf32>
    %cst_14 = arith.constant dense<0xFF800000> : vector<1xf32>
    %29 = vector.multi_reduction <maximumf>, %28, %cst_14 [1] : vector<1x65xf32> to vector<1xf32>
    %30 = vector.shape_cast %29 : vector<1xf32> to vector<1x1xf32>
    %31 = vector.broadcast %30 : vector<1x1xf32> to vector<1x65xf32>
    %32 = arith.subf %28, %31 : vector<1x65xf32>
    %33 = math.exp %32 : vector<1x65xf32>
    %cst_15 = arith.constant dense<0.000000e+00> : vector<1xf32>
    %34 = vector.multi_reduction <add>, %33, %cst_15 [1] : vector<1x65xf32> to vector<1xf32>
    %35 = vector.shape_cast %34 : vector<1xf32> to vector<1x1xf32>
    %36 = tpu.reciprocal %35 {approx = true} : vector<1x1xf32> -> vector<1x1xf32>
    %37 = vector.broadcast %36 : vector<1x1xf32> to vector<1x65xf32>
    %38 = arith.mulf %33, %37 : vector<1x65xf32>
    %39 = arith.truncf %38 : vector<1x65xf32> to vector<1x65xbf16>
    %cst_16 = arith.constant dense<0.000000e+00> : vector<1x16xf32>
    %40 = tpu.matmul %39, %27, %cst_16 {dimension_numbers = #tpu.dot_dimension_numbers<[1], [0], [0], [1], [0, 0, 1, 1], [], []>} : vector<1x65xbf16>, vector<65x16xbf16>, vector<1x16xf32> -> vector<1x16xf32>
    %41 = vector.extract_strided_slice %6 {offsets = [0, 32], sizes = [1, 16], strides = [1, 1]} : vector<1x64xbf16> to vector<1x16xbf16>
    %42 = vector.extract_strided_slice %8 {offsets = [0, 32], sizes = [65, 16], strides = [1, 1]} : vector<65x128xbf16> to vector<65x16xbf16>
    %43 = vector.extract_strided_slice %8 {offsets = [0, 96], sizes = [65, 16], strides = [1, 1]} : vector<65x128xbf16> to vector<65x16xbf16>
    %cst_17 = arith.constant dense<0.000000e+00> : vector<1x65xf32>
    %44 = tpu.matmul %41, %42, %cst_17 {dimension_numbers = #tpu.dot_dimension_numbers<[1], [1], [0], [0], [0, 0, 1, 0], [], []>} : vector<1x16xbf16>, vector<65x16xbf16>, vector<1x65xf32> -> vector<1x65xf32>
    %cst_18 = arith.constant dense<0xFF800000> : vector<1xf32>
    %45 = vector.multi_reduction <maximumf>, %44, %cst_18 [1] : vector<1x65xf32> to vector<1xf32>
    %46 = vector.shape_cast %45 : vector<1xf32> to vector<1x1xf32>
    %47 = vector.broadcast %46 : vector<1x1xf32> to vector<1x65xf32>
    %48 = arith.subf %44, %47 : vector<1x65xf32>
    %49 = math.exp %48 : vector<1x65xf32>
    %cst_19 = arith.constant dense<0.000000e+00> : vector<1xf32>
    %50 = vector.multi_reduction <add>, %49, %cst_19 [1] : vector<1x65xf32> to vector<1xf32>
    %51 = vector.shape_cast %50 : vector<1xf32> to vector<1x1xf32>
    %52 = tpu.reciprocal %51 {approx = true} : vector<1x1xf32> -> vector<1x1xf32>
    %53 = vector.broadcast %52 : vector<1x1xf32> to vector<1x65xf32>
    %54 = arith.mulf %49, %53 : vector<1x65xf32>
    %55 = arith.truncf %54 : vector<1x65xf32> to vector<1x65xbf16>
    %cst_20 = arith.constant dense<0.000000e+00> : vector<1x16xf32>
    %56 = tpu.matmul %55, %43, %cst_20 {dimension_numbers = #tpu.dot_dimension_numbers<[1], [0], [0], [1], [0, 0, 1, 1], [], []>} : vector<1x65xbf16>, vector<65x16xbf16>, vector<1x16xf32> -> vector<1x16xf32>
    %57 = vector.extract_strided_slice %6 {offsets = [0, 48], sizes = [1, 16], strides = [1, 1]} : vector<1x64xbf16> to vector<1x16xbf16>
    %58 = vector.extract_strided_slice %8 {offsets = [0, 48], sizes = [65, 16], strides = [1, 1]} : vector<65x128xbf16> to vector<65x16xbf16>
    %59 = vector.extract_strided_slice %8 {offsets = [0, 112], sizes = [65, 16], strides = [1, 1]} : vector<65x128xbf16> to vector<65x16xbf16>
    %cst_21 = arith.constant dense<0.000000e+00> : vector<1x65xf32>
    %60 = tpu.matmul %57, %58, %cst_21 {dimension_numbers = #tpu.dot_dimension_numbers<[1], [1], [0], [0], [0, 0, 1, 0], [], []>} : vector<1x16xbf16>, vector<65x16xbf16>, vector<1x65xf32> -> vector<1x65xf32>
    %cst_22 = arith.constant dense<0xFF800000> : vector<1xf32>
    %61 = vector.multi_reduction <maximumf>, %60, %cst_22 [1] : vector<1x65xf32> to vector<1xf32>
    %62 = vector.shape_cast %61 : vector<1xf32> to vector<1x1xf32>
    %63 = vector.broadcast %62 : vector<1x1xf32> to vector<1x65xf32>
    %64 = arith.subf %60, %63 : vector<1x65xf32>
    %65 = math.exp %64 : vector<1x65xf32>
    %cst_23 = arith.constant dense<0.000000e+00> : vector<1xf32>
    %66 = vector.multi_reduction <add>, %65, %cst_23 [1] : vector<1x65xf32> to vector<1xf32>
    %67 = vector.shape_cast %66 : vector<1xf32> to vector<1x1xf32>
    %68 = tpu.reciprocal %67 {approx = true} : vector<1x1xf32> -> vector<1x1xf32>
    %69 = vector.broadcast %68 : vector<1x1xf32> to vector<1x65xf32>
    %70 = arith.mulf %65, %69 : vector<1x65xf32>
    %71 = arith.truncf %70 : vector<1x65xf32> to vector<1x65xbf16>
    %cst_24 = arith.constant dense<0.000000e+00> : vector<1x16xf32>
    %72 = tpu.matmul %71, %59, %cst_24 {dimension_numbers = #tpu.dot_dimension_numbers<[1], [0], [0], [1], [0, 0, 1, 1], [], []>} : vector<1x65xbf16>, vector<65x16xbf16>, vector<1x16xf32> -> vector<1x16xf32>
    %73 = tpu.concatenate %24, %40, %56, %72 in 1 : vector<1x16xf32>, vector<1x16xf32>, vector<1x16xf32>, vector<1x16xf32> -> vector<1x64xf32>
    %74 = arith.truncf %73 : vector<1x64xf32> to vector<1x64xbf16>
    %c0_25 = arith.constant 0 : index
    %c0_26 = arith.constant 0 : index
    %75 = vector.load %arg5[%c0_25, %c0_26] : memref<64x32xbf16, #tpu.memory_space<vmem>>, vector<64x32xbf16>
    %cst_27 = arith.constant dense<0.000000e+00> : vector<1x32xf32>
    %76 = tpu.matmul %74, %75, %cst_27 {dimension_numbers = #tpu.dot_dimension_numbers<[1], [0], [0], [1], [0, 0, 1, 1], [], []>} : vector<1x64xbf16>, vector<64x32xbf16>, vector<1x32xf32> -> vector<1x32xf32>
    %c0_28 = arith.constant 0 : index
    %c0_29 = arith.constant 0 : index
    %77 = vector.load %arg6[%c0_28, %c0_29] : memref<1x32xf32, #tpu.memory_space<vmem>>, vector<1x32xf32>
    %78 = arith.addf %76, %77 : vector<1x32xf32>
    %c0_30 = arith.constant 0 : index
    %c0_31 = arith.constant 0 : index
    %c0_32 = arith.constant 0 : index
    %79 = vector.load %arg7[%c0_30, %c0_31, %c0_32] : memref<1x1x32xf32, #tpu.memory_space<vmem>>, vector<1x1x32xf32>
    %80 = vector.shape_cast %79 : vector<1x1x32xf32> to vector<1x32xf32>
    %81 = vector.shape_cast %78 : vector<1x32xf32> to vector<1x1x32xf32>
    tpu.vector_store %arg7[%c0_30, %c0_31, %c0_32], %81 {strides = array<i32>} : memref<1x1x32xf32, #tpu.memory_space<vmem>>, vector<1x1x32xf32>,
    return
  }
  func.func @transform_0(%arg0: i32) -> (i32, i32, i32) {
    %c0_i32 = arith.constant 0 : i32
    %c0_i32_0 = arith.constant 0 : i32
    %c0_i32_1 = arith.constant 0 : i32
    return %arg0, %c0_i32, %c0_i32_0 : i32, i32, i32
  }
  func.func @transform_1(%arg0: i32) -> (i32, i32, i32) {
    %c0_i32 = arith.constant 0 : i32
    %c0_i32_0 = arith.constant 0 : i32
    %c0_i32_1 = arith.constant 0 : i32
    return %arg0, %c0_i32, %c0_i32_0 : i32, i32, i32
  }
  func.func @transform_2(%arg0: i32) -> (i32, i32) {
    %c0_i32 = arith.constant 0 : i32
    %c0_i32_0 = arith.constant 0 : i32
    %c0_i32_1 = arith.constant 0 : i32
    return %c0_i32, %c0_i32_0 : i32, i32
  }
  func.func @transform_3(%arg0: i32) -> (i32, i32) {
    %c0_i32 = arith.constant 0 : i32
    %c0_i32_0 = arith.constant 0 : i32
    %c0_i32_1 = arith.constant 0 : i32
    return %c0_i32, %c0_i32_0 : i32, i32
  }
  func.func @transform_4(%arg0: i32) -> (i32, i32) {
    %c0_i32 = arith.constant 0 : i32
    %c0_i32_0 = arith.constant 0 : i32
    %c0_i32_1 = arith.constant 0 : i32
    return %c0_i32, %c0_i32_0 : i32, i32
  }
  func.func @transform_5(%arg0: i32) -> (i32, i32) {
    %c0_i32 = arith.constant 0 : i32
    %c0_i32_0 = arith.constant 0 : i32
    %c0_i32_1 = arith.constant 0 : i32
    return %c0_i32, %c0_i32_0 : i32, i32
  }
  func.func @transform_6(%arg0: i32) -> (i32, i32, i32) {
    %c0_i32 = arith.constant 0 : i32
    %c0_i32_0 = arith.constant 0 : i32
    %c0_i32_1 = arith.constant 0 : i32
    return %arg0, %c0_i32, %c0_i32_0 : i32, i32, i32
  }
}

</mosaic_0001>

<llo_original>
// kernel: attention_pool2d.2
$region0: #{attention_pool2d.2}
  #allocation0 [shape = 'u32[]', space=smem, size = 0x4, offset = 0x4, fixed_abs, tag = 'smem constant byte address 0x4 - core index']
  #allocation1 [shape = 'u32[144,128]{1,0:T(1,128)}', space=vmem, size = 0x12000, scoped, tag = 'internal scratch']
  %s0 = inlined_call_operand.vmem [shape: bf16[130,64], index: 0, kind: input, shape index: {}]
  %s1 = inlined_call_operand.vmem [shape: bf16[64,128], index: 1, kind: input, shape index: {}]
  %s2 = inlined_call_operand.vmem [shape: f32[1,128], index: 2, kind: input, shape index: {}]
  %s3 = inlined_call_operand.vmem [shape: bf16[130,128], index: 3, kind: output, shape index: {}]
  %s4 = sld [smem:[#allocation0]]
  $region22: #{attention_pool2d.2} parent=0
    _
  %s6 = ssub.s32 1, %s4
  %s7 = scalar_select 0, %s6, %s4
  // Predicated region
  $region2: #{attention_pool2d.2} parent=0 // pred_check
    _
  $region3: #{attention_pool2d.2} parent=0 // pred_check_branch
    %9 = sbr.rel (0) target = $region5
  $region4: #{attention_pool2d.2} parent=0 // pred_region
    _
  $region5: #{attention_pool2d.2} parent=0 // pred_fallthru
    _
  // Predicated region
  $region6: #{attention_pool2d.2} parent=0 // pred_check
    _
  $region7: #{attention_pool2d.2} parent=0 // pred_check_branch
    %11 = sbr.rel (0) target = $region9
  $region8: #{attention_pool2d.2} parent=0 // pred_region
    _
  $region9: #{attention_pool2d.2} parent=0 // pred_fallthru
    _
  // Predicated region
  $region10: #{attention_pool2d.2} parent=0 // pred_check
    _
  $region11: #{attention_pool2d.2} parent=0 // pred_check_branch
    %13 = sbr.rel (0) target = $region13
  $region12: #{attention_pool2d.2} parent=0 // pred_region
    _
  $region13: #{attention_pool2d.2} parent=0 // pred_fallthru
    _
  %v15 = vld [vmem:[%s0] sm:$0xf]
  %v16 = vld [vmem:[%s0 + $0x4] sm:$0xf]
  %v17 = vld [vmem:[%s0 + $0x8] sm:$0xf]
  %v18 = vld [vmem:[%s0 + $0xc] sm:$0xf]
  %v19 = vld [vmem:[%s0 + $0x10] sm:$0xf]
  %v20 = vld [vmem:[%s0 + $0x14] sm:$0xf]
  %v21 = vld [vmem:[%s0 + $0x18] sm:$0xf]
  %v22 = vld [vmem:[%s0 + $0x1c] sm:$0xf]
  %v23 = vld [vmem:[%s0 + $0x20] sm:$0xf]
  %v24 = vld [vmem:[%s0 + $0x24] sm:$0xf]
  %v25 = vld [vmem:[%s0 + $0x28] sm:$0xf]
  %v26 = vld [vmem:[%s0 + $0x2c] sm:$0xf]
  %v27 = vld [vmem:[%s0 + $0x30] sm:$0xf]
  %v28 = vld [vmem:[%s0 + $0x34] sm:$0xf]
  %v29 = vld [vmem:[%s0 + $0x38] sm:$0xf]
  %v30 = vld [vmem:[%s0 + $0x3c] sm:$0xf]
  %v31 = vld [vmem:[%s0 + $0x40] sm:$0x1]
  %v32 = vld [vmem:[%s1] sm:$0xf]
  %v33 = vld [vmem:[%s1 + $0x4] sm:$0xf]
  %v34 = vld [vmem:[%s1 + $0x8] sm:$0xf]
  %v35 = vld [vmem:[%s1 + $0xc] sm:$0xf]
  %v36 = vld [vmem:[%s1 + $0x10] sm:$0xf]
  %v37 = vld [vmem:[%s1 + $0x14] sm:$0xf]
  %v38 = vld [vmem:[%s1 + $0x18] sm:$0xf]
  %v39 = vld [vmem:[%s1 + $0x1c] sm:$0xf]
  %v40 = vld [vmem:[%s2] sm:$0x1]
  %v42 = vlaneseq
  %v43 = vshrl.u32 %v42, 7
  %v44 = vsub.s32 0, %v43
  %v45 = vrot.slane %v40, %v44
  %v64 = vunpack.c.l.b16 %v15
  %v65 = vunpack.c.l.b16 %v16
  %v66 = vunpack.c.l.b16 %v17
  %v67 = vunpack.c.l.b16 %v18
  %v68 = vunpack.c.l.b16 %v19
  %v69 = vunpack.c.l.b16 %v20
  %v70 = vunpack.c.l.b16 %v21
  %v71 = vunpack.c.l.b16 %v22
  %v72 = vunpack.c.l.b16 %v23
  %v73 = vunpack.c.l.b16 %v24
  %v74 = vunpack.c.l.b16 %v25
  %v75 = vunpack.c.l.b16 %v26
  %v76 = vunpack.c.l.b16 %v27
  %v77 = vunpack.c.l.b16 %v28
  %v78 = vunpack.c.l.b16 %v29
  %v79 = vunpack.c.l.b16 %v30
  %v80 = vunpack.c.l.b16 %v31
  %v81 = vpack.c.b16 %v65, %v64
  %v82 = vpack.c.b16 %v67, %v66
  %v83 = vpack.c.b16 %v69, %v68
  %v84 = vpack.c.b16 %v71, %v70
  %v85 = vpack.c.b16 %v73, %v72
  %v86 = vpack.c.b16 %v75, %v74
  %v87 = vpack.c.b16 %v77, %v76
  %v88 = vpack.c.b16 %v79, %v78
  %v89 = vpack.c.b16 %v80, %v80
  %v98 = vunpack.c.l.b16 %v32
  %v99 = vunpack.c.l.b16 %v33
  %v100 = vunpack.c.l.b16 %v34
  %v101 = vunpack.c.l.b16 %v35
  %v102 = vunpack.c.l.b16 %v36
  %v103 = vunpack.c.l.b16 %v37
  %v104 = vunpack.c.l.b16 %v38
  %v105 = vunpack.c.l.b16 %v39
  %v106 = vpack.c.b16 %v99, %v98
  %v107 = vpack.c.b16 %v101, %v100
  %v108 = vpack.c.b16 %v103, %v102
  %v109 = vpack.c.b16 %v105, %v104
  %vm114 = vcmask 523264
  %v116 = vsel %vm114, %v81, 0
  %v119 = vsel %vm114, %v82, 0
  %v122 = vsel %vm114, %v83, 0
  %v125 = vsel %vm114, %v84, 0
  %v128 = vsel %vm114, %v85, 0
  %v131 = vsel %vm114, %v86, 0
  %v134 = vsel %vm114, %v87, 0
  %v137 = vsel %vm114, %v88, 0
  %v140 = vsel %vm114, %v89, 0
  %142 = vmatprep.subr.bf16.mxu0 0
  %143 = vmatpush1.bf16.msra.mxu0 %v106
  %144 = vmatprep.subr.bf16.mxu0 0
  %145 = vmatpush1.bf16.msra.mxu0 %v107
  %146 = vmatprep.subr.bf16.mxu0 0
  %147 = vmatpush1.bf16.msra.mxu0 %v108
  %148 = vmatprep.subr.bf16.mxu0 0
  %149 = vmatpush1.bf16.msra.mxu0 %v109
  %150 = vmatprep.subr.bf16.mxu0 0
  %151 = vmatpush1.bf16.msra.mxu0 0
  %152 = vmatprep.subr.bf16.mxu0 0
  %153 = vmatpush1.bf16.msra.mxu0 0
  %154 = vmatprep.subr.bf16.mxu0 0
  %155 = vmatpush1.bf16.msra.mxu0 0
  %156 = vmatprep.subr.bf16.mxu0 0
  %157 = vmatpush1.bf16.msra.mxu0 0
  %158 = vmatprep.subr.bf16.mxu0 0
  %159 = vmatpush1.bf16.msra.mxu0 0
  %160 = vmatprep.subr.bf16.mxu0 0
  %161 = vmatpush1.bf16.msra.mxu0 0
  %162 = vmatprep.subr.bf16.mxu0 0
  %163 = vmatpush1.bf16.msra.mxu0 0
  %164 = vmatprep.subr.bf16.mxu0 0
  %165 = vmatpush1.bf16.msra.mxu0 0
  %166 = vmatprep.subr.bf16.mxu0 0
  %167 = vmatpush1.bf16.msra.mxu0 0
  %168 = vmatprep.subr.bf16.mxu0 0
  %169 = vmatpush1.bf16.msra.mxu0 0
  %170 = vmatprep.subr.bf16.mxu0 0
  %171 = vmatpush1.bf16.msra.mxu0 0
  %172 = vmatprep.subr.bf16.mxu0 0
  %173 = vmatpush1.bf16.msra.mxu0 0
  %174 = vmatprep.mubr.bf16.mxu0 0
  %175 = vmatmul.mubr.bf16.gmra.mrb[0].mxu0 %v116
  %v176 = vpop.f32.mrb[0].mxu0
  %v177 = vadd.f32 %v45, %v176
  %v178 = vpop.f32.mrb[0].mxu0
  %v179 = vpop.f32.mrb[0].mxu0
  %v180 = vadd.f32 %v45, %v179
  %v181 = vpop.f32.mrb[0].mxu0
  %182 = vmatprep.mubr.bf16.mxu0 0
  %183 = vmatmul.mubr.bf16.gmra.mrb[0].mxu0 %v119
  %v184 = vpop.f32.mrb[0].mxu0
  %v185 = vadd.f32 %v45, %v184
  %v186 = vpop.f32.mrb[0].mxu0
  %v187 = vpop.f32.mrb[0].mxu0
  %v188 = vadd.f32 %v45, %v187
  %v189 = vpop.f32.mrb[0].mxu0
  %190 = vmatprep.mubr.bf16.mxu0 0
  %191 = vmatmul.mubr.bf16.gmra.mrb[0].mxu0 %v122
  %v192 = vpop.f32.mrb[0].mxu0
  %v193 = vadd.f32 %v45, %v192
  %v194 = vpop.f32.mrb[0].mxu0
  %v195 = vpop.f32.mrb[0].mxu0
  %v196 = vadd.f32 %v45, %v195
  %v197 = vpop.f32.mrb[0].mxu0
  %198 = vmatprep.mubr.bf16.mxu0 0
  %199 = vmatmul.mubr.bf16.gmra.mrb[0].mxu0 %v125
  %v200 = vpop.f32.mrb[0].mxu0
  %v201 = vadd.f32 %v45, %v200
  %v202 = vpop.f32.mrb[0].mxu0
  %v203 = vpop.f32.mrb[0].mxu0
  %v204 = vadd.f32 %v45, %v203
  %v205 = vpop.f32.mrb[0].mxu0
  %206 = vmatprep.mubr.bf16.mxu0 0
  %207 = vmatmul.mubr.bf16.gmra.mrb[0].mxu0 %v128
  %v208 = vpop.f32.mrb[0].mxu0
  %v209 = vadd.f32 %v45, %v208
  %v210 = vpop.f32.mrb[0].mxu0
  %v211 = vpop.f32.mrb[0].mxu0
  %v212 = vadd.f32 %v45, %v211
  %v213 = vpop.f32.mrb[0].mxu0
  %214 = vmatprep.mubr.bf16.mxu0 0
  %215 = vmatmul.mubr.bf16.gmra.mrb[0].mxu0 %v131
  %v216 = vpop.f32.mrb[0].mxu0
  %v217 = vadd.f32 %v45, %v216
  %v218 = vpop.f32.mrb[0].mxu0
  %v219 = vpop.f32.mrb[0].mxu0
  %v220 = vadd.f32 %v45, %v219
  %v221 = vpop.f32.mrb[0].mxu0
  %222 = vmatprep.mubr.bf16.mxu0 0
  %223 = vmatmul.mubr.bf16.gmra.mrb[0].mxu0 %v134
  %v224 = vpop.f32.mrb[0].mxu0
  %v225 = vadd.f32 %v45, %v224
  %v226 = vpop.f32.mrb[0].mxu0
  %v227 = vpop.f32.mrb[0].mxu0
  %v228 = vadd.f32 %v45, %v227
  %v229 = vpop.f32.mrb[0].mxu0
  %230 = vmatprep.mubr.bf16.mxu0 0
  %231 = vmatmul.mubr.bf16.gmra.mrb[0].mxu0 %v137
  %v232 = vpop.f32.mrb[0].mxu0
  %v233 = vadd.f32 %v45, %v232
  %v234 = vpop.f32.mrb[0].mxu0
  %v235 = vpop.f32.mrb[0].mxu0
  %v236 = vadd.f32 %v45, %v235
  %v237 = vpop.f32.mrb[0].mxu0
  %238 = vmatprep.mubr.bf16.mxu0 0
  %239 = vmatmul.mubr.bf16.gmra.mrb[0].mxu0 %v140
  %v240 = vpop.f32.mrb[0].mxu0
  %v241 = vadd.f32 %v45, %v240
  %v242 = vpop.f32.mrb[0].mxu0
  %v243 = vpop.f32.mrb[0].mxu0
  %v244 = vpop.f32.mrb[0].mxu0
  %245 = vdwg.mxu0
  %v246 = vpack.c.bf16 %v180, %v177
  %v247 = vpack.c.bf16 %v188, %v185
  %v248 = vpack.c.bf16 %v196, %v193
  %v249 = vpack.c.bf16 %v204, %v201
  %v250 = vpack.c.bf16 %v212, %v209
  %v251 = vpack.c.bf16 %v220, %v217
  %v252 = vpack.c.bf16 %v228, %v225
  %v253 = vpack.c.bf16 %v236, %v233
  %v254 = vpack.c.bf16 %v241, %v241
  %v264 = vunpack.c.l.b16 %v246
  %v265 = vunpack.c.h.b16 %v246
  %v266 = vunpack.c.l.b16 %v247
  %v267 = vunpack.c.h.b16 %v247
  %v268 = vunpack.c.l.b16 %v248
  %v269 = vunpack.c.h.b16 %v248
  %v270 = vunpack.c.l.b16 %v249
  %v271 = vunpack.c.h.b16 %v249
  %v272 = vunpack.c.l.b16 %v250
  %v273 = vunpack.c.h.b16 %v250
  %v274 = vunpack.c.l.b16 %v251
  %v275 = vunpack.c.h.b16 %v251
  %v276 = vunpack.c.l.b16 %v252
  %v277 = vunpack.c.h.b16 %v252
  %v278 = vunpack.c.l.b16 %v253
  %v279 = vunpack.c.h.b16 %v253
  %v280 = vunpack.c.l.b16 %v254
  %v281 = vpack.c.b16 %v264, %v264
  %v282 = vpack.c.b16 %v265, %v265
  %v283 = vpack.c.b16 %v266, %v266
  %v284 = vpack.c.b16 %v267, %v267
  %v285 = vpack.c.b16 %v268, %v268
  %v286 = vpack.c.b16 %v269, %v269
  %v287 = vpack.c.b16 %v270, %v270
  %v288 = vpack.c.b16 %v271, %v271
  %v289 = vpack.c.b16 %v272, %v272
  %v290 = vpack.c.b16 %v273, %v273
  %v291 = vpack.c.b16 %v274, %v274
  %v292 = vpack.c.b16 %v275, %v275
  %v293 = vpack.c.b16 %v276, %v276
  %v294 = vpack.c.b16 %v277, %v277
  %v295 = vpack.c.b16 %v278, %v278
  %v296 = vpack.c.b16 %v279, %v279
  %v297 = vpack.c.b16 %v280, %v280
  %315 = vst [vmem:[%s3] sm:$0xf] %v281
  %316 = vst [vmem:[%s3 + $0x4] sm:$0xf] %v282
  %317 = vst [vmem:[%s3 + $0x8] sm:$0xf] %v283
  %318 = vst [vmem:[%s3 + $0xc] sm:$0xf] %v284
  %319 = vst [vmem:[%s3 + $0x10] sm:$0xf] %v285
  %320 = vst [vmem:[%s3 + $0x14] sm:$0xf] %v286
  %321 = vst [vmem:[%s3 + $0x18] sm:$0xf] %v287
  %322 = vst [vmem:[%s3 + $0x1c] sm:$0xf] %v288
  %323 = vst [vmem:[%s3 + $0x20] sm:$0xf] %v289
  %324 = vst [vmem:[%s3 + $0x24] sm:$0xf] %v290
  %325 = vst [vmem:[%s3 + $0x28] sm:$0xf] %v291
  %326 = vst [vmem:[%s3 + $0x2c] sm:$0xf] %v292
  %327 = vst [vmem:[%s3 + $0x30] sm:$0xf] %v293
  %328 = vst [vmem:[%s3 + $0x34] sm:$0xf] %v294
  %329 = vst [vmem:[%s3 + $0x38] sm:$0xf] %v295
  %330 = vst [vmem:[%s3 + $0x3c] sm:$0xf] %v296
  %331 = vst [vmem:[%s3 + $0x40] sm:$0x1] %v297
  // Predicated region
  $region14: #{attention_pool2d.2} parent=0 // pred_check
    _
  $region15: #{attention_pool2d.2} parent=0 // pred_check_branch
    %333 = sbr.rel (0) target = $region17
  $region16: #{attention_pool2d.2} parent=0 // pred_region
    _
  $region17: #{attention_pool2d.2} parent=0 // pred_fallthru
    _
  // Predicated region
  $region18: #{attention_pool2d.2} parent=0 // pred_check
    _
  $region19: #{attention_pool2d.2} parent=0 // pred_check_branch
    %335 = sbr.rel (0) target = $region21
  $region20: #{attention_pool2d.2} parent=0 // pred_region
    _
  $region21: #{attention_pool2d.2} parent=0 // pred_fallthru
    _

// kernel: attention_pool2d.3
$region0: #{attention_pool2d.3}
  #allocation0 [shape = 'u32[]', space=smem, size = 0x4, offset = 0x4, fixed_abs, tag = 'smem constant byte address 0x4 - core index']
  #allocation1 [shape = 'u32[144,128]{1,0:T(1,128)}', space=vmem, size = 0x12000, scoped, tag = 'internal scratch']
  %s0 = inlined_call_operand.vmem [shape: bf16[2,1,64], index: 0, kind: input, shape index: {}]
  %s1 = inlined_call_operand.vmem [shape: bf16[2,65,128], index: 1, kind: input, shape index: {}]
  %s2 = inlined_call_operand.vmem [shape: bf16[64,64], index: 2, kind: input, shape index: {}]
  %s3 = inlined_call_operand.vmem [shape: f32[1,64], index: 3, kind: input, shape index: {}]
  %s4 = inlined_call_operand.vmem [shape: bf16[64,32], index: 4, kind: input, shape index: {}]
  %s5 = inlined_call_operand.vmem [shape: f32[1,32], index: 5, kind: input, shape index: {}]
  %s6 = inlined_call_operand.hbm [shape: f32[2,1,32], index: 6, kind: output, shape index: {}]
  %s7 = sld [smem:[#allocation0]]
  $region57: #{attention_pool2d.3} parent=0
    _
  %s9 = ssub.s32 1, %s7
  %s10 = scalar_select 0, %s9, %s7
  $region1: #{attention_pool2d.3} parent=0
    #allocation2 [shape = 'u8[1024]{0}', space=vmem, size = 0x400, scoped, tag = 'output window, operand 0']
    #allocation3 [shape = 's32[2]{0}', space=sflag, size = 0x8, scoped, tag = 'scoped memory for attention_pool2d.3']
    %11 = vsyncpa [#allocation3], 0
    %s12 = scalar_lea.sflag [#allocation3], 1
    %13 = vsyncpa %s12, 0
    loop: start=0, step=1, limit=4
    $region2: #{attention_pool2d.3} parent=1 // loop_pre_header
      _
    $region3: #{attention_pool2d.3} parent=1 // loop_header
      %s15 = sphi 0, %s19
      %p16 = scmp.ge.s32.totalorder %s15, 4
      %s25 = sphi 0, %s27
      %s28 = sphi 0, %s25
      %s29 = sphi 0, %s28
      %s45 = sphi 0, %s29
      %s51 = sphi 0, %s53
      %s54 = sphi 0, %s51
      %s55 = sphi 0, %s54
      %s71 = sphi 0, %s55
      %s75 = sphi 0, %s75
      %s77 = sphi 0, %s75
      %s78 = sphi 0, %s77
      %s92 = sphi 0, %s78
      %s96 = sphi 0, %s96
      %s98 = sphi 0, %s96
      %s99 = sphi 0, %s98
      %s113 = sphi 0, %s99
      %s117 = sphi 0, %s117
      %s119 = sphi 0, %s117
      %s120 = sphi 0, %s119
      %s134 = sphi 0, %s120
      %s138 = sphi 0, %s138
      %s140 = sphi 0, %s138
      %s141 = sphi 0, %s140
      %s155 = sphi 0, %s141
      %s161 = sphi 0, %s163
      %s164 = sphi 0, %s161
      %s165 = sphi 0, %s164
      %s181 = sphi 0, %s165
    $region4: #{attention_pool2d.3} parent=1 // loop_header_branch
      %18 = sbr.rel (%p16) target = $region8
    $region5: #{attention_pool2d.3} parent=1 // loop_body
      %s20 = ssub.s32 %s15, 1
      %s21 = ssub.s32 %s15, 2
      %s22 = sadd.s32 %s15, 1
      %s23 = ssub.s32 %s15, %s22
      %p24 = scmp.eq.s32.totalorder %s23, 0
      %s26 = sadd.s32 %s25, 1
      %s27 = scalar_select %p24, %s25, %s26
      %p30 = pneg %p24
      %p31 = scmp.eq.s32.totalorder %s15, 1
      %p32 = por %p30, %p31
      %p33 = scmp.ne.s32.totalorder %s25, %s28
      %p34 = scmp.eq.s32.totalorder %s15, 0
      %p35 = por %p33, %p34
      %p36 = scmp.ne.s32.totalorder %s25, %s28
      %p37 = scmp.eq.s32.totalorder %s20, 1
      %p38 = por %p36, %p37
      %p39 = scmp.ne.s32.totalorder %s28, %s29
      %p40 = scmp.eq.s32.totalorder %s20, 0
      %p41 = por %p39, %p40
      %p42 = scmp.ne.s32.totalorder %s28, %s29
      %p43 = scmp.eq.s32.totalorder %s21, 1
      %p44 = por %p42, %p43
      %p46 = scmp.ne.s32.totalorder %s29, %s45
      %p47 = scmp.eq.s32.totalorder %s21, 0
      %p48 = por %p46, %p47
      %s49 = ssub.s32 %s15, %s22
      %p50 = scmp.eq.s32.totalorder %s49, 0
      %s52 = sadd.s32 %s51, 1
      %s53 = scalar_select %p50, %s51, %s52
      %p56 = pneg %p50
      %p57 = scmp.eq.s32.totalorder %s15, 1
      %p58 = por %p56, %p57
      %p59 = scmp.ne.s32.totalorder %s51, %s54
      %p60 = scmp.eq.s32.totalorder %s15, 0
      %p61 = por %p59, %p60
      %p62 = scmp.ne.s32.totalorder %s51, %s54
      %p63 = scmp.eq.s32.totalorder %s20, 1
      %p64 = por %p62, %p63
      %p65 = scmp.ne.s32.totalorder %s54, %s55
      %p66 = scmp.eq.s32.totalorder %s20, 0
      %p67 = por %p65, %p66
      %p68 = scmp.ne.s32.totalorder %s54, %s55
      %p69 = scmp.eq.s32.totalorder %s21, 1
      %p70 = por %p68, %p69
      %p72 = scmp.ne.s32.totalorder %s55, %s71
      %p73 = scmp.eq.s32.totalorder %s21, 0
      %p74 = por %p72, %p73
      %s76 = sadd.s32 %s75, 1
      %p79 = scmp.eq.s32.totalorder %s15, 1
      %p80 = scmp.ne.s32.totalorder %s75, %s77
      %p81 = scmp.eq.s32.totalorder %s15, 0
      %p82 = por %p80, %p81
      %p83 = scmp.ne.s32.totalorder %s75, %s77
      %p84 = scmp.eq.s32.totalorder %s20, 1
      %p85 = por %p83, %p84
      %p86 = scmp.ne.s32.totalorder %s77, %s78
      %p87 = scmp.eq.s32.totalorder %s20, 0
      %p88 = por %p86, %p87
      %p89 = scmp.ne.s32.totalorder %s77, %s78
      %p90 = scmp.eq.s32.totalorder %s21, 1
      %p91 = por %p89, %p90
      %p93 = scmp.ne.s32.totalorder %s78, %s92
      %p94 = scmp.eq.s32.totalorder %s21, 0
      %p95 = por %p93, %p94
      %s97 = sadd.s32 %s96, 1
      %p100 = scmp.eq.s32.totalorder %s15, 1
      %p101 = scmp.ne.s32.totalorder %s96, %s98
      %p102 = scmp.eq.s32.totalorder %s15, 0
      %p103 = por %p101, %p102
      %p104 = scmp.ne.s32.totalorder %s96, %s98
      %p105 = scmp.eq.s32.totalorder %s20, 1
      %p106 = por %p104, %p105
      %p107 = scmp.ne.s32.totalorder %s98, %s99
      %p108 = scmp.eq.s32.totalorder %s20, 0
      %p109 = por %p107, %p108
      %p110 = scmp.ne.s32.totalorder %s98, %s99
      %p111 = scmp.eq.s32.totalorder %s21, 1
      %p112 = por %p110, %p111
      %p114 = scmp.ne.s32.totalorder %s99, %s113
      %p115 = scmp.eq.s32.totalorder %s21, 0
      %p116 = por %p114, %p115
      %s118 = sadd.s32 %s117, 1
      %p121 = scmp.eq.s32.totalorder %s15, 1
      %p122 = scmp.ne.s32.totalorder %s117, %s119
      %p123 = scmp.eq.s32.totalorder %s15, 0
      %p124 = por %p122, %p123
      %p125 = scmp.ne.s32.totalorder %s117, %s119
      %p126 = scmp.eq.s32.totalorder %s20, 1
      %p127 = por %p125, %p126
      %p128 = scmp.ne.s32.totalorder %s119, %s120
      %p129 = scmp.eq.s32.totalorder %s20, 0
      %p130 = por %p128, %p129
      %p131 = scmp.ne.s32.totalorder %s119, %s120
      %p132 = scmp.eq.s32.totalorder %s21, 1
      %p133 = por %p131, %p132
      %p135 = scmp.ne.s32.totalorder %s120, %s134
      %p136 = scmp.eq.s32.totalorder %s21, 0
      %p137 = por %p135, %p136
      %s139 = sadd.s32 %s138, 1
      %p142 = scmp.eq.s32.totalorder %s15, 1
      %p143 = scmp.ne.s32.totalorder %s138, %s140
      %p144 = scmp.eq.s32.totalorder %s15, 0
      %p145 = por %p143, %p144
      %p146 = scmp.ne.s32.totalorder %s138, %s140
      %p147 = scmp.eq.s32.totalorder %s20, 1
      %p148 = por %p146, %p147
      %p149 = scmp.ne.s32.totalorder %s140, %s141
      %p150 = scmp.eq.s32.totalorder %s20, 0
      %p151 = por %p149, %p150
      %p152 = scmp.ne.s32.totalorder %s140, %s141
      %p153 = scmp.eq.s32.totalorder %s21, 1
      %p154 = por %p152, %p153
      %p156 = scmp.ne.s32.totalorder %s141, %s155
      %p157 = scmp.eq.s32.totalorder %s21, 0
      %p158 = por %p156, %p157
      %s159 = ssub.s32 %s15, %s22
      %p160 = scmp.eq.s32.totalorder %s159, 0
      %s162 = sadd.s32 %s161, 1
      %s163 = scalar_select %p160, %s161, %s162
      %p166 = pneg %p160
      %p167 = scmp.eq.s32.totalorder %s15, 1
      %p168 = por %p166, %p167
      %p169 = scmp.ne.s32.totalorder %s161, %s164
      %p170 = scmp.eq.s32.totalorder %s15, 0
      %p171 = por %p169, %p170
      %p172 = scmp.ne.s32.totalorder %s161, %s164
      %p173 = scmp.eq.s32.totalorder %s20, 1
      %p174 = por %p172, %p173
      %p175 = scmp.ne.s32.totalorder %s164, %s165
      %p176 = scmp.eq.s32.totalorder %s20, 0
      %p177 = por %p175, %p176
      %p178 = scmp.ne.s32.totalorder %s164, %s165
      %p179 = scmp.eq.s32.totalorder %s21, 1
      %p180 = por %p178, %p179
      %p182 = scmp.ne.s32.totalorder %s165, %s181
      %p183 = scmp.eq.s32.totalorder %s21, 0
      %p184 = por %p182, %p183
      %p185 = scmp.le.s32.totalorder 1, %s15
      %p186 = scmp.lt.s32.totalorder %s15, 3
      %p187 = pnand %p185, %p186
      %p188 = pneg %p187
      // Predicated region
      $region9: #{attention_pool2d.3} parent=5 // pred_check
        _
      $region10: #{attention_pool2d.3} parent=5 // pred_check_branch
        %190 = sbr.rel (%p187) target = $region12
      $region11: #{attention_pool2d.3} parent=5 // pred_region
        %s191 = ssub.s32 %s15, 1
        // Predicated region
        $region13: #{attention_pool2d.3} parent=11 // pred_check
          %p192 = pneg %p88
        $region14: #{attention_pool2d.3} parent=11 // pred_check_branch
          %194 = sbr.rel (%p192) target = $region16
        $region15: #{attention_pool2d.3} parent=11 // pred_region
          _
        $region16: #{attention_pool2d.3} parent=11 // pred_fallthru
          _
        // Predicated region
        $region17: #{attention_pool2d.3} parent=11 // pred_check
          %p195 = pneg %p109
        $region18: #{attention_pool2d.3} parent=11 // pred_check_branch
          %197 = sbr.rel (%p195) target = $region20
        $region19: #{attention_pool2d.3} parent=11 // pred_region
          _
        $region20: #{attention_pool2d.3} parent=11 // pred_fallthru
          _
        // Predicated region
        $region21: #{attention_pool2d.3} parent=11 // pred_check
          %p198 = pneg %p130
        $region22: #{attention_pool2d.3} parent=11 // pred_check_branch
          %200 = sbr.rel (%p198) target = $region24
        $region23: #{attention_pool2d.3} parent=11 // pred_region
          _
        $region24: #{attention_pool2d.3} parent=11 // pred_fallthru
          _
        // Predicated region
        $region25: #{attention_pool2d.3} parent=11 // pred_check
          %p201 = pneg %p151
        $region26: #{attention_pool2d.3} parent=11 // pred_check_branch
          %203 = sbr.rel (%p201) target = $region28
        $region27: #{attention_pool2d.3} parent=11 // pred_region
          _
        $region28: #{attention_pool2d.3} parent=11 // pred_fallthru
          _
      $region12: #{attention_pool2d.3} parent=5 // pred_fallthru
        _
      %p204 = scmp.lt.s32.totalorder %s15, 2
      // Predicated region
      $region29: #{attention_pool2d.3} parent=5 // pred_check
        %p205 = pneg %p204
      $region30: #{attention_pool2d.3} parent=5 // pred_check_branch
        %207 = sbr.rel (%p205) target = $region32
      $region31: #{attention_pool2d.3} parent=5 // pred_region
        // Predicated region
        $region33: #{attention_pool2d.3} parent=31 // pred_check
          %p208 = pneg %p35
        $region34: #{attention_pool2d.3} parent=31 // pred_check_branch
          %210 = sbr.rel (%p208) target = $region36
        $region35: #{attention_pool2d.3} parent=31 // pred_region
          %p211 = scmp.lt.s32.totalorder %s15, 1
          %s212 = scalar_select %p211, %s15, 1
          %s213 = scalar_lea.vmem %s0, %s212
        $region36: #{attention_pool2d.3} parent=31 // pred_fallthru
          _
        // Predicated region
        $region37: #{attention_pool2d.3} parent=31 // pred_check
          %p214 = pneg %p61
        $region38: #{attention_pool2d.3} parent=31 // pred_check_branch
          %216 = sbr.rel (%p214) target = $region40
        $region39: #{attention_pool2d.3} parent=31 // pred_region
          %p217 = scmp.lt.s32.totalorder %s15, 1
          %s218 = scalar_select %p217, %s15, 1
          %s219 = smul.addr %s218, 9
          %s220 = smul.addr %s219, 4
          %s221 = scalar_lea.vmem %s1, %s220
        $region40: #{attention_pool2d.3} parent=31 // pred_fallthru
          _
      $region32: #{attention_pool2d.3} parent=5 // pred_fallthru
        _
      %p222 = scmp.le.s32.totalorder 1, %s15
      %p223 = scmp.lt.s32.totalorder %s15, 3
      %p224 = pnand %p222, %p223
      %p225 = pneg %p224
      // Predicated region
      $region41: #{attention_pool2d.3} parent=5 // pred_check
        _
      $region42: #{attention_pool2d.3} parent=5 // pred_check_branch
        %227 = sbr.rel (%p224) target = $region44
      $region43: #{attention_pool2d.3} parent=5 // pred_region
        %s228 = ssub.s32 %s15, 1
        %p229 = scmp.lt.s32.totalorder %s20, 1
        %s230 = scalar_select %p229, %s20, 1
        %s231 = scalar_lea.vmem %s0, %s230
        %p232 = pneg %p41
        %p233 = pneg %p38
        %p234 = scmp.lt.s32.totalorder %s20, 1
        %s235 = scalar_select %p234, %s20, 1
        %s236 = smul.addr %s235, 9
        %s237 = smul.addr %s236, 4
        %s238 = scalar_lea.vmem %s1, %s237
        %p239 = pneg %p67
        %p240 = pneg %p64
        %p241 = pneg %p88
        %p242 = pneg %p85
        %p243 = pneg %p109
        %p244 = pneg %p106
        %p245 = pneg %p130
        %p246 = pneg %p127
        %p247 = pneg %p151
        %p248 = pneg %p148
        %p249 = pneg %p177
        %p250 = pneg %p174
        %s251 = sand.u32 %s164, 1
        %s252 = scalar_lea.sflag [#allocation3], %s251
        %s253 = sand.u32 %s164, 1
        %s254 = scalar_lea.vmem [#allocation2], %s253
        %p255 = scmp.lt.s32.totalorder %s20, 1
        %s256 = scalar_select %p255, %s20, 1
        %s257 = scalar_lea.vmem %s0, %s256
        %p258 = scmp.lt.s32.totalorder %s20, 1
        %s259 = scalar_select %p258, %s20, 1
        %s260 = smul.addr %s259, 9
        %s261 = smul.addr %s260, 4
        %s262 = scalar_lea.vmem %s1, %s261
        %v264 = vld [vmem:[%s257] sm:$0x1]
        %v265 = vld [vmem:[%s2] sm:$0xf]
        %v266 = vld [vmem:[%s2 + $0x4] sm:$0xf]
        %v267 = vld [vmem:[%s2 + $0x8] sm:$0xf]
        %v268 = vld [vmem:[%s2 + $0xc] sm:$0xf]
        %v269 = vld [vmem:[%s2 + $0x10] sm:$0xf]
        %v270 = vld [vmem:[%s2 + $0x14] sm:$0xf]
        %v271 = vld [vmem:[%s2 + $0x18] sm:$0xf]
        %v272 = vld [vmem:[%s2 + $0x1c] sm:$0xf]
        %v273 = vld [vmem:[%s3] sm:$0x1]
        %v282 = vunpack.c.l.b16 %v265
        %v283 = vunpack.c.l.b16 %v266
        %v284 = vunpack.c.l.b16 %v267
        %v285 = vunpack.c.l.b16 %v268
        %v286 = vunpack.c.l.b16 %v269
        %v287 = vunpack.c.l.b16 %v270
        %v288 = vunpack.c.l.b16 %v271
        %v289 = vunpack.c.l.b16 %v272
        %v290 = vpack.c.b16 %v283, %v282
        %v291 = vpack.c.b16 %v285, %v284
        %v292 = vpack.c.b16 %v287, %v286
        %v293 = vpack.c.b16 %v289, %v288
        %vm298 = vcmask 523264
        %v300 = vsel %vm298, %v264, 0
        %302 = vmatprep.subr.bf16.mxu0 0
        %303 = vmatpush1.bf16.msra.mxu0 %v290
        %304 = vmatprep.subr.bf16.mxu0 0
        %305 = vmatpush1.bf16.msra.mxu0 %v291
        %306 = vmatprep.subr.bf16.mxu0 0
        %307 = vmatpush1.bf16.msra.mxu0 %v292
        %308 = vmatprep.subr.bf16.mxu0 0
        %309 = vmatpush1.bf16.msra.mxu0 %v293
        %310 = vmatprep.subr.bf16.mxu0 0
        %311 = vmatpush1.bf16.msra.mxu0 0
        %312 = vmatprep.subr.bf16.mxu0 0
        %313 = vmatpush1.bf16.msra.mxu0 0
        %314 = vmatprep.subr.bf16.mxu0 0
        %315 = vmatpush1.bf16.msra.mxu0 0
        %316 = vmatprep.subr.bf16.mxu0 0
        %317 = vmatpush1.bf16.msra.mxu0 0
        %318 = vmatprep.subr.bf16.mxu0 0
        %319 = vmatpush1.bf16.msra.mxu0 0
        %320 = vmatprep.subr.bf16.mxu0 0
        %321 = vmatpush1.bf16.msra.mxu0 0
        %322 = vmatprep.subr.bf16.mxu0 0
        %323 = vmatpush1.bf16.msra.mxu0 0
        %324 = vmatprep.subr.bf16.mxu0 0
        %325 = vmatpush1.bf16.msra.mxu0 0
        %326 = vmatprep.subr.bf16.mxu0 0
        %327 = vmatpush1.bf16.msra.mxu0 0
        %328 = vmatprep.subr.bf16.mxu0 0
        %329 = vmatpush1.bf16.msra.mxu0 0
        %330 = vmatprep.subr.bf16.mxu0 0
        %331 = vmatpush1.bf16.msra.mxu0 0
        %332 = vmatprep.subr.bf16.mxu0 0
        %333 = vmatpush1.bf16.msra.mxu0 0
        %334 = vmatprep.mubr.bf16.mxu0 0
        %335 = vmatmul.mubr.bf16.gmra.mrb[0].mxu0 %v300
        %v336 = vpop.f32.mrb[0].mxu0
        %v337 = vadd.f32 %v273, %v336
        %v338 = vpop.f32.mrb[0].mxu0
        %v339 = vpop.f32.mrb[0].mxu0
        %v340 = vpop.f32.mrb[0].mxu0
        %341 = vdwg.mxu0
        %v342 = vpack.c.bf16 %v337, %v337
        %v343 = vld [vmem:[%s262] sm:$0xf]
        %v344 = vld [vmem:[%s262 + $0x4] sm:$0xf]
        %v345 = vld [vmem:[%s262 + $0x8] sm:$0xf]
        %v346 = vld [vmem:[%s262 + $0xc] sm:$0xf]
        %v347 = vld [vmem:[%s262 + $0x10] sm:$0xf]
        %v348 = vld [vmem:[%s262 + $0x14] sm:$0xf]
        %v349 = vld [vmem:[%s262 + $0x18] sm:$0xf]
        %v350 = vld [vmem:[%s262 + $0x1c] sm:$0xf]
        %v351 = vld [vmem:[%s262 + $0x20] sm:$0x1]
        %v361 = vunpack.c.l.b16 %v343
        %v362 = vunpack.c.l.b16 %v344
        %v363 = vunpack.c.l.b16 %v345
        %v364 = vunpack.c.l.b16 %v346
        %v365 = vunpack.c.l.b16 %v347
        %v366 = vunpack.c.l.b16 %v348
        %v367 = vunpack.c.l.b16 %v349
        %v368 = vunpack.c.l.b16 %v350
        %v369 = vunpack.c.l.b16 %v351
        %v370 = vpack.c.b16 %v362, %v361
        %v371 = vpack.c.b16 %v364, %v363
        %v372 = vpack.c.b16 %v366, %v365
        %v373 = vpack.c.b16 %v368, %v367
        %v374 = vpack.c.b16 %v369, %v369
        %vm375 = vcmask 130048
        %v377 = vsel %vm375, %v342, 0
        %v380 = vsel %vm375, %v370, 0
        %v383 = vsel %vm375, %v371, 0
        %v386 = vsel %vm375, %v372, 0
        %v389 = vsel %vm375, %v373, 0
        %v392 = vsel %vm375, %v374, 0
        %394 = vmatprep.subr.bf16.mxu0 0
        %395 = vmatpush1.bf16.xpose.msra.mxu0 %v380
        %396 = vmatprep.subr.bf16.mxu0 0
        %397 = vmatpush1.bf16.xpose.msra.mxu0 %v383
        %398 = vmatprep.subr.bf16.mxu0 0
        %399 = vmatpush1.bf16.xpose.msra.mxu0 %v386
        %400 = vmatprep.subr.bf16.mxu0 0
        %401 = vmatpush1.bf16.xpose.msra.mxu0 %v389
        %402 = vmatprep.subr.bf16.mxu0 0
        %403 = vmatpush1.bf16.xpose.msra.mxu0 %v392
        %404 = vmatprep.subr.bf16.mxu0 0
        %405 = vmatpush1.bf16.xpose.msra.mxu0 0
        %406 = vmatprep.subr.bf16.mxu0 0
        %407 = vmatpush1.bf16.xpose.msra.mxu0 0
        %408 = vmatprep.subr.bf16.mxu0 0
        %409 = vmatpush1.bf16.xpose.msra.mxu0 0
        %410 = vmatprep.subr.bf16.mxu0 0
        %411 = vmatpush1.bf16.xpose.msra.mxu0 0
        %412 = vmatprep.subr.bf16.mxu0 0
        %413 = vmatpush1.bf16.xpose.msra.mxu0 0
        %414 = vmatprep.subr.bf16.mxu0 0
        %415 = vmatpush1.bf16.xpose.msra.mxu0 0
        %416 = vmatprep.subr.bf16.mxu0 0
        %417 = vmatpush1.bf16.xpose.msra.mxu0 0
        %418 = vmatprep.subr.bf16.mxu0 0
        %419 = vmatpush1.bf16.xpose.msra.mxu0 0
        %420 = vmatprep.subr.bf16.mxu0 0
        %421 = vmatpush1.bf16.xpose.msra.mxu0 0
        %422 = vmatprep.subr.bf16.mxu0 0
        %423 = vmatpush1.bf16.xpose.msra.mxu0 0
        %424 = vmatprep.subr.bf16.mxu0 0
        %425 = vmatpush1.bf16.xpose.msra.mxu0 0
        %426 = vmatprep.mubr.bf16.mxu0 0
        %427 = vmatmul.mubr.bf16.gmra.mrb[0].mxu0 %v377
        %v428 = vpop.f32.mrb[0].mxu0
        %v429 = vadd.f32 0.0, %v428
        %v430 = vpop.f32.mrb[0].mxu0
        %v431 = vpop.f32.mrb[0].mxu0
        %v432 = vpop.f32.mrb[0].mxu0
        %433 = vdwg.mxu0
        %vm434 = vcmask 524288
        %v435 = vsel %vm434, %v429, -inf
        %436 = vmax.xlane.f32.xlu0 %v435
        %v437 = vpop.xlane.xlu0 %436
        %v438 = vsub.f32 %v429, %v437
        %v439 = vmul.f32 %v438, 1.442695
        %v440 = vpow.pop %v439
        %v441 = vsel %vm434, %v440, 0.0
        %442 = vadd.xlane.f32.xlu0 %v441
        %v443 = vpop.xlane.xlu0 %442
        %v444 = vrcp.pop %v443
        %v445 = vmul.f32 %v440, %v444
        %v446 = vpack.c.bf16 %v445, %v445
        %447 = vrot.lane.b32.xlu0 %v370, 64
        %v448 = vpop.permute.xlu0 %447
        %449 = vrot.lane.b32.xlu0 %v371, 64
        %v450 = vpop.permute.xlu0 %449
        %451 = vrot.lane.b32.xlu0 %v372, 64
        %v452 = vpop.permute.xlu0 %451
        %453 = vrot.lane.b32.xlu0 %v373, 64
        %v454 = vpop.permute.xlu0 %453
        %455 = vrot.lane.b32.xlu0 %v374, 64
        %v456 = vpop.permute.xlu0 %455
        %vm461 = vcmask 531456
        %v463 = vsel %vm461, %v446, 0
        %vm465 = vcmask 1040384
        %v466 = vsel 0, 4294967295, 65535
        %v467 = vsel %vm465, %v466, 0
        %v469 = vand.u32 %v456, %v467
        %471 = vmatprep.subr.bf16.mxu0 0
        %472 = vmatpush1.bf16.msra.mxu0 %v448
        %473 = vmatprep.subr.bf16.mxu0 0
        %474 = vmatpush1.bf16.msra.mxu0 %v450
        %475 = vmatprep.subr.bf16.mxu0 0
        %476 = vmatpush1.bf16.msra.mxu0 %v452
        %477 = vmatprep.subr.bf16.mxu0 0
        %478 = vmatpush1.bf16.msra.mxu0 %v454
        %479 = vmatprep.subr.bf16.mxu0 0
        %480 = vmatpush1.bf16.msra.mxu0 %v469
        %481 = vmatprep.subr.bf16.mxu0 0
        %482 = vmatpush1.bf16.msra.mxu0 0
        %483 = vmatprep.subr.bf16.mxu0 0
        %484 = vmatpush1.bf16.msra.mxu0 0
        %485 = vmatprep.subr.bf16.mxu0 0
        %486 = vmatpush1.bf16.msra.mxu0 0
        %487 = vmatprep.subr.bf16.mxu0 0
        %488 = vmatpush1.bf16.msra.mxu0 0
        %489 = vmatprep.subr.bf16.mxu0 0
        %490 = vmatpush1.bf16.msra.mxu0 0
        %491 = vmatprep.subr.bf16.mxu0 0
        %492 = vmatpush1.bf16.msra.mxu0 0
        %493 = vmatprep.subr.bf16.mxu0 0
        %494 = vmatpush1.bf16.msra.mxu0 0
        %495 = vmatprep.subr.bf16.mxu0 0
        %496 = vmatpush1.bf16.msra.mxu0 0
        %497 = vmatprep.subr.bf16.mxu0 0
        %498 = vmatpush1.bf16.msra.mxu0 0
        %499 = vmatprep.subr.bf16.mxu0 0
        %500 = vmatpush1.bf16.msra.mxu0 0
        %501 = vmatprep.subr.bf16.mxu0 0
        %502 = vmatpush1.bf16.msra.mxu0 0
        %503 = vmatprep.mubr.bf16.mxu0 0
        %504 = vmatmul.mubr.bf16.gmra.mrb[0].mxu0 %v463
        %v505 = vpop.f32.mrb[0].mxu0
        %v506 = vadd.f32 0.0, %v505
        %v507 = vpop.f32.mrb[0].mxu0
        %v508 = vpop.f32.mrb[0].mxu0
        %v509 = vpop.f32.mrb[0].mxu0
        %510 = vdwg.mxu0
        %512 = vrot.lane.b32.xlu0 %v342, 112
        %v513 = vpop.permute.xlu0 %512
        %514 = vrot.lane.b32.xlu0 %v370, 112
        %v515 = vpop.permute.xlu0 %514
        %516 = vrot.lane.b32.xlu0 %v371, 112
        %v517 = vpop.permute.xlu0 %516
        %518 = vrot.lane.b32.xlu0 %v372, 112
        %v519 = vpop.permute.xlu0 %518
        %520 = vrot.lane.b32.xlu0 %v373, 112
        %v521 = vpop.permute.xlu0 %520
        %522 = vrot.lane.b32.xlu0 %v374, 112
        %v523 = vpop.permute.xlu0 %522
        %v525 = vsel %vm375, %v513, 0
        %v528 = vsel %vm375, %v515, 0
        %v531 = vsel %vm375, %v517, 0
        %v534 = vsel %vm375, %v519, 0
        %v537 = vsel %vm375, %v521, 0
        %v540 = vsel %vm375, %v523, 0
        %542 = vmatprep.subr.bf16.mxu0 0
        %543 = vmatpush1.bf16.xpose.msra.mxu0 %v528
        %544 = vmatprep.subr.bf16.mxu0 0
        %545 = vmatpush1.bf16.xpose.msra.mxu0 %v531
        %546 = vmatprep.subr.bf16.mxu0 0
        %547 = vmatpush1.bf16.xpose.msra.mxu0 %v534
        %548 = vmatprep.subr.bf16.mxu0 0
        %549 = vmatpush1.bf16.xpose.msra.mxu0 %v537
        %550 = vmatprep.subr.bf16.mxu0 0
        %551 = vmatpush1.bf16.xpose.msra.mxu0 %v540
        %552 = vmatprep.subr.bf16.mxu0 0
        %553 = vmatpush1.bf16.xpose.msra.mxu0 0
        %554 = vmatprep.subr.bf16.mxu0 0
        %555 = vmatpush1.bf16.xpose.msra.mxu0 0
        %556 = vmatprep.subr.bf16.mxu0 0
        %557 = vmatpush1.bf16.xpose.msra.mxu0 0
        %558 = vmatprep.subr.bf16.mxu0 0
        %559 = vmatpush1.bf16.xpose.msra.mxu0 0
        %560 = vmatprep.subr.bf16.mxu0 0
        %561 = vmatpush1.bf16.xpose.msra.mxu0 0
        %562 = vmatprep.subr.bf16.mxu0 0
        %563 = vmatpush1.bf16.xpose.msra.mxu0 0
        %564 = vmatprep.subr.bf16.mxu0 0
        %565 = vmatpush1.bf16.xpose.msra.mxu0 0
        %566 = vmatprep.subr.bf16.mxu0 0
        %567 = vmatpush1.bf16.xpose.msra.mxu0 0
        %568 = vmatprep.subr.bf16.mxu0 0
        %569 = vmatpush1.bf16.xpose.msra.mxu0 0
        %570 = vmatprep.subr.bf16.mxu0 0
        %571 = vmatpush1.bf16.xpose.msra.mxu0 0
        %572 = vmatprep.subr.bf16.mxu0 0
        %573 = vmatpush1.bf16.xpose.msra.mxu0 0
        %574 = vmatprep.mubr.bf16.mxu0 0
        %575 = vmatmul.mubr.bf16.gmra.mrb[0].mxu0 %v525
        %v576 = vpop.f32.mrb[0].mxu0
        %v577 = vadd.f32 0.0, %v576
        %v578 = vpop.f32.mrb[0].mxu0
        %v579 = vpop.f32.mrb[0].mxu0
        %v580 = vpop.f32.mrb[0].mxu0
        %581 = vdwg.mxu0
        %v582 = vsel %vm434, %v577, -inf
        %583 = vmax.xlane.f32.xlu0 %v582
        %v584 = vpop.xlane.xlu0 %583
        %v585 = vsub.f32 %v577, %v584
        %v586 = vmul.f32 %v585, 1.442695
        %v587 = vpow.pop %v586
        %v588 = vsel %vm434, %v587, 0.0
        %589 = vadd.xlane.f32.xlu0 %v588
        %v590 = vpop.xlane.xlu0 %589
        %v591 = vrcp.pop %v590
        %v592 = vmul.f32 %v587, %v591
        %v593 = vpack.c.bf16 %v592, %v592
        %594 = vrot.lane.b32.xlu0 %v370, 48
        %v595 = vpop.permute.xlu0 %594
        %596 = vrot.lane.b32.xlu0 %v371, 48
        %v597 = vpop.permute.xlu0 %596
        %598 = vrot.lane.b32.xlu0 %v372, 48
        %v599 = vpop.permute.xlu0 %598
        %600 = vrot.lane.b32.xlu0 %v373, 48
        %v601 = vpop.permute.xlu0 %600
        %602 = vrot.lane.b32.xlu0 %v374, 48
        %v603 = vpop.permute.xlu0 %602
        %v609 = vsel %vm461, %v593, 0
        %v612 = vand.u32 %v603, %v467
        %614 = vmatprep.subr.bf16.mxu0 0
        %615 = vmatpush1.bf16.msra.mxu0 %v595
        %616 = vmatprep.subr.bf16.mxu0 0
        %617 = vmatpush1.bf16.msra.mxu0 %v597
        %618 = vmatprep.subr.bf16.mxu0 0
        %619 = vmatpush1.bf16.msra.mxu0 %v599
        %620 = vmatprep.subr.bf16.mxu0 0
        %621 = vmatpush1.bf16.msra.mxu0 %v601
        %622 = vmatprep.subr.bf16.mxu0 0
        %623 = vmatpush1.bf16.msra.mxu0 %v612
        %624 = vmatprep.subr.bf16.mxu0 0
        %625 = vmatpush1.bf16.msra.mxu0 0
        %626 = vmatprep.subr.bf16.mxu0 0
        %627 = vmatpush1.bf16.msra.mxu0 0
        %628 = vmatprep.subr.bf16.mxu0 0
        %629 = vmatpush1.bf16.msra.mxu0 0
        %630 = vmatprep.subr.bf16.mxu0 0
        %631 = vmatpush1.bf16.msra.mxu0 0
        %632 = vmatprep.subr.bf16.mxu0 0
        %633 = vmatpush1.bf16.msra.mxu0 0
        %634 = vmatprep.subr.bf16.mxu0 0
        %635 = vmatpush1.bf16.msra.mxu0 0
        %636 = vmatprep.subr.bf16.mxu0 0
        %637 = vmatpush1.bf16.msra.mxu0 0
        %638 = vmatprep.subr.bf16.mxu0 0
        %639 = vmatpush1.bf16.msra.mxu0 0
        %640 = vmatprep.subr.bf16.mxu0 0
        %641 = vmatpush1.bf16.msra.mxu0 0
        %642 = vmatprep.subr.bf16.mxu0 0
        %643 = vmatpush1.bf16.msra.mxu0 0
        %644 = vmatprep.subr.bf16.mxu0 0
        %645 = vmatpush1.bf16.msra.mxu0 0
        %646 = vmatprep.mubr.bf16.mxu0 0
        %647 = vmatmul.mubr.bf16.gmra.mrb[0].mxu0 %v609
        %v648 = vpop.f32.mrb[0].mxu0
        %v649 = vadd.f32 0.0, %v648
        %v650 = vpop.f32.mrb[0].mxu0
        %v651 = vpop.f32.mrb[0].mxu0
        %v652 = vpop.f32.mrb[0].mxu0
        %653 = vdwg.mxu0
        %654 = vrot.lane.b32.xlu0 %v342, 96
        %v655 = vpop.permute.xlu0 %654
        %656 = vrot.lane.b32.xlu0 %v370, 96
        %v657 = vpop.permute.xlu0 %656
        %658 = vrot.lane.b32.xlu0 %v371, 96
        %v659 = vpop.permute.xlu0 %658
        %660 = vrot.lane.b32.xlu0 %v372, 96
        %v661 = vpop.permute.xlu0 %660
        %662 = vrot.lane.b32.xlu0 %v373, 96
        %v663 = vpop.permute.xlu0 %662
        %664 = vrot.lane.b32.xlu0 %v374, 96
        %v665 = vpop.permute.xlu0 %664
        %v667 = vsel %vm375, %v655, 0
        %v670 = vsel %vm375, %v657, 0
        %v673 = vsel %vm375, %v659, 0
        %v676 = vsel %vm375, %v661, 0
        %v679 = vsel %vm375, %v663, 0
        %v682 = vsel %vm375, %v665, 0
        %684 = vmatprep.subr.bf16.mxu0 0
        %685 = vmatpush1.bf16.xpose.msra.mxu0 %v670
        %686 = vmatprep.subr.bf16.mxu0 0
        %687 = vmatpush1.bf16.xpose.msra.mxu0 %v673
        %688 = vmatprep.subr.bf16.mxu0 0
        %689 = vmatpush1.bf16.xpose.msra.mxu0 %v676
        %690 = vmatprep.subr.bf16.mxu0 0
        %691 = vmatpush1.bf16.xpose.msra.mxu0 %v679
        %692 = vmatprep.subr.bf16.mxu0 0
        %693 = vmatpush1.bf16.xpose.msra.mxu0 %v682
        %694 = vmatprep.subr.bf16.mxu0 0
        %695 = vmatpush1.bf16.xpose.msra.mxu0 0
        %696 = vmatprep.subr.bf16.mxu0 0
        %697 = vmatpush1.bf16.xpose.msra.mxu0 0
        %698 = vmatprep.subr.bf16.mxu0 0
        %699 = vmatpush1.bf16.xpose.msra.mxu0 0
        %700 = vmatprep.subr.bf16.mxu0 0
        %701 = vmatpush1.bf16.xpose.msra.mxu0 0
        %702 = vmatprep.subr.bf16.mxu0 0
        %703 = vmatpush1.bf16.xpose.msra.mxu0 0
        %704 = vmatprep.subr.bf16.mxu0 0
        %705 = vmatpush1.bf16.xpose.msra.mxu0 0
        %706 = vmatprep.subr.bf16.mxu0 0
        %707 = vmatpush1.bf16.xpose.msra.mxu0 0
        %708 = vmatprep.subr.bf16.mxu0 0
        %709 = vmatpush1.bf16.xpose.msra.mxu0 0
        %710 = vmatprep.subr.bf16.mxu0 0
        %711 = vmatpush1.bf16.xpose.msra.mxu0 0
        %712 = vmatprep.subr.bf16.mxu0 0
        %713 = vmatpush1.bf16.xpose.msra.mxu0 0
        %714 = vmatprep.subr.bf16.mxu0 0
        %715 = vmatpush1.bf16.xpose.msra.mxu0 0
        %716 = vmatprep.mubr.bf16.mxu0 0
        %717 = vmatmul.mubr.bf16.gmra.mrb[0].mxu0 %v667
        %v718 = vpop.f32.mrb[0].mxu0
        %v719 = vadd.f32 0.0, %v718
        %v720 = vpop.f32.mrb[0].mxu0
        %v721 = vpop.f32.mrb[0].mxu0
        %v722 = vpop.f32.mrb[0].mxu0
        %723 = vdwg.mxu0
        %v724 = vsel %vm434, %v719, -inf
        %725 = vmax.xlane.f32.xlu0 %v724
        %v726 = vpop.xlane.xlu0 %725
        %v727 = vsub.f32 %v719, %v726
        %v728 = vmul.f32 %v727, 1.442695
        %v729 = vpow.pop %v728
        %v730 = vsel %vm434, %v729, 0.0
        %731 = vadd.xlane.f32.xlu0 %v730
        %v732 = vpop.xlane.xlu0 %731
        %v733 = vrcp.pop %v732
        %v734 = vmul.f32 %v729, %v733
        %v735 = vpack.c.bf16 %v734, %v734
        %736 = vrot.lane.b32.xlu0 %v370, 32
        %v737 = vpop.permute.xlu0 %736
        %738 = vrot.lane.b32.xlu0 %v371, 32
        %v739 = vpop.permute.xlu0 %738
        %740 = vrot.lane.b32.xlu0 %v372, 32
        %v741 = vpop.permute.xlu0 %740
        %742 = vrot.lane.b32.xlu0 %v373, 32
        %v743 = vpop.permute.xlu0 %742
        %744 = vrot.lane.b32.xlu0 %v374, 32
        %v745 = vpop.permute.xlu0 %744
        %v751 = vsel %vm461, %v735, 0
        %v754 = vand.u32 %v745, %v467
        %756 = vmatprep.subr.bf16.mxu0 0
        %757 = vmatpush1.bf16.msra.mxu0 %v737
        %758 = vmatprep.subr.bf16.mxu0 0
        %759 = vmatpush1.bf16.msra.mxu0 %v739
        %760 = vmatprep.subr.bf16.mxu0 0
        %761 = vmatpush1.bf16.msra.mxu0 %v741
        %762 = vmatprep.subr.bf16.mxu0 0
        %763 = vmatpush1.bf16.msra.mxu0 %v743
        %764 = vmatprep.subr.bf16.mxu0 0
        %765 = vmatpush1.bf16.msra.mxu0 %v754
        %766 = vmatprep.subr.bf16.mxu0 0
        %767 = vmatpush1.bf16.msra.mxu0 0
        %768 = vmatprep.subr.bf16.mxu0 0
        %769 = vmatpush1.bf16.msra.mxu0 0
        %770 = vmatprep.subr.bf16.mxu0 0
        %771 = vmatpush1.bf16.msra.mxu0 0
        %772 = vmatprep.subr.bf16.mxu0 0
        %773 = vmatpush1.bf16.msra.mxu0 0
        %774 = vmatprep.subr.bf16.mxu0 0
        %775 = vmatpush1.bf16.msra.mxu0 0
        %776 = vmatprep.subr.bf16.mxu0 0
        %777 = vmatpush1.bf16.msra.mxu0 0
        %778 = vmatprep.subr.bf16.mxu0 0
        %779 = vmatpush1.bf16.msra.mxu0 0
        %780 = vmatprep.subr.bf16.mxu0 0
        %781 = vmatpush1.bf16.msra.mxu0 0
        %782 = vmatprep.subr.bf16.mxu0 0
        %783 = vmatpush1.bf16.msra.mxu0 0
        %784 = vmatprep.subr.bf16.mxu0 0
        %785 = vmatpush1.bf16.msra.mxu0 0
        %786 = vmatprep.subr.bf16.mxu0 0
        %787 = vmatpush1.bf16.msra.mxu0 0
        %788 = vmatprep.mubr.bf16.mxu0 0
        %789 = vmatmul.mubr.bf16.gmra.mrb[0].mxu0 %v751
        %v790 = vpop.f32.mrb[0].mxu0
        %v791 = vadd.f32 0.0, %v790
        %v792 = vpop.f32.mrb[0].mxu0
        %v793 = vpop.f32.mrb[0].mxu0
        %v794 = vpop.f32.mrb[0].mxu0
        %795 = vdwg.mxu0
        %796 = vrot.lane.b32.xlu0 %v342, 80
        %v797 = vpop.permute.xlu0 %796
        %798 = vrot.lane.b32.xlu0 %v370, 80
        %v799 = vpop.permute.xlu0 %798
        %800 = vrot.lane.b32.xlu0 %v371, 80
        %v801 = vpop.permute.xlu0 %800
        %802 = vrot.lane.b32.xlu0 %v372, 80
        %v803 = vpop.permute.xlu0 %802
        %804 = vrot.lane.b32.xlu0 %v373, 80
        %v805 = vpop.permute.xlu0 %804
        %806 = vrot.lane.b32.xlu0 %v374, 80
        %v807 = vpop.permute.xlu0 %806
        %v809 = vsel %vm375, %v797, 0
        %v812 = vsel %vm375, %v799, 0
        %v815 = vsel %vm375, %v801, 0
        %v818 = vsel %vm375, %v803, 0
        %v821 = vsel %vm375, %v805, 0
        %v824 = vsel %vm375, %v807, 0
        %826 = vmatprep.subr.bf16.mxu0 0
        %827 = vmatpush1.bf16.xpose.msra.mxu0 %v812
        %828 = vmatprep.subr.bf16.mxu0 0
        %829 = vmatpush1.bf16.xpose.msra.mxu0 %v815
        %830 = vmatprep.subr.bf16.mxu0 0
        %831 = vmatpush1.bf16.xpose.msra.mxu0 %v818
        %832 = vmatprep.subr.bf16.mxu0 0
        %833 = vmatpush1.bf16.xpose.msra.mxu0 %v821
        %834 = vmatprep.subr.bf16.mxu0 0
        %835 = vmatpush1.bf16.xpose.msra.mxu0 %v824
        %836 = vmatprep.subr.bf16.mxu0 0
        %837 = vmatpush1.bf16.xpose.msra.mxu0 0
        %838 = vmatprep.subr.bf16.mxu0 0
        %839 = vmatpush1.bf16.xpose.msra.mxu0 0
        %840 = vmatprep.subr.bf16.mxu0 0
        %841 = vmatpush1.bf16.xpose.msra.mxu0 0
        %842 = vmatprep.subr.bf16.mxu0 0
        %843 = vmatpush1.bf16.xpose.msra.mxu0 0
        %844 = vmatprep.subr.bf16.mxu0 0
        %845 = vmatpush1.bf16.xpose.msra.mxu0 0
        %846 = vmatprep.subr.bf16.mxu0 0
        %847 = vmatpush1.bf16.xpose.msra.mxu0 0
        %848 = vmatprep.subr.bf16.mxu0 0
        %849 = vmatpush1.bf16.xpose.msra.mxu0 0
        %850 = vmatprep.subr.bf16.mxu0 0
        %851 = vmatpush1.bf16.xpose.msra.mxu0 0
        %852 = vmatprep.subr.bf16.mxu0 0
        %853 = vmatpush1.bf16.xpose.msra.mxu0 0
        %854 = vmatprep.subr.bf16.mxu0 0
        %855 = vmatpush1.bf16.xpose.msra.mxu0 0
        %856 = vmatprep.subr.bf16.mxu0 0
        %857 = vmatpush1.bf16.xpose.msra.mxu0 0
        %858 = vmatprep.mubr.bf16.mxu0 0
        %859 = vmatmul.mubr.bf16.gmra.mrb[0].mxu0 %v809
        %v860 = vpop.f32.mrb[0].mxu0
        %v861 = vadd.f32 0.0, %v860
        %v862 = vpop.f32.mrb[0].mxu0
        %v863 = vpop.f32.mrb[0].mxu0
        %v864 = vpop.f32.mrb[0].mxu0
        %865 = vdwg.mxu0
        %v866 = vsel %vm434, %v861, -inf
        %867 = vmax.xlane.f32.xlu0 %v866
        %v868 = vpop.xlane.xlu0 %867
        %v869 = vsub.f32 %v861, %v868
        %v870 = vmul.f32 %v869, 1.442695
        %v871 = vpow.pop %v870
        %v872 = vsel %vm434, %v871, 0.0
        %873 = vadd.xlane.f32.xlu0 %v872
        %v874 = vpop.xlane.xlu0 %873
        %v875 = vrcp.pop %v874
        %v876 = vmul.f32 %v871, %v875
        %v877 = vpack.c.bf16 %v876, %v876
        %878 = vrot.lane.b32.xlu0 %v370, 16
        %v879 = vpop.permute.xlu0 %878
        %880 = vrot.lane.b32.xlu0 %v371, 16
        %v881 = vpop.permute.xlu0 %880
        %882 = vrot.lane.b32.xlu0 %v372, 16
        %v883 = vpop.permute.xlu0 %882
        %884 = vrot.lane.b32.xlu0 %v373, 16
        %v885 = vpop.permute.xlu0 %884
        %886 = vrot.lane.b32.xlu0 %v374, 16
        %v887 = vpop.permute.xlu0 %886
        %v893 = vsel %vm461, %v877, 0
        %v896 = vand.u32 %v887, %v467
        %898 = vmatprep.subr.bf16.mxu0 0
        %899 = vmatpush1.bf16.msra.mxu0 %v879
        %900 = vmatprep.subr.bf16.mxu0 0
        %901 = vmatpush1.bf16.msra.mxu0 %v881
        %902 = vmatprep.subr.bf16.mxu0 0
        %903 = vmatpush1.bf16.msra.mxu0 %v883
        %904 = vmatprep.subr.bf16.mxu0 0
        %905 = vmatpush1.bf16.msra.mxu0 %v885
        %906 = vmatprep.subr.bf16.mxu0 0
        %907 = vmatpush1.bf16.msra.mxu0 %v896
        %908 = vmatprep.subr.bf16.mxu0 0
        %909 = vmatpush1.bf16.msra.mxu0 0
        %910 = vmatprep.subr.bf16.mxu0 0
        %911 = vmatpush1.bf16.msra.mxu0 0
        %912 = vmatprep.subr.bf16.mxu0 0
        %913 = vmatpush1.bf16.msra.mxu0 0
        %914 = vmatprep.subr.bf16.mxu0 0
        %915 = vmatpush1.bf16.msra.mxu0 0
        %916 = vmatprep.subr.bf16.mxu0 0
        %917 = vmatpush1.bf16.msra.mxu0 0
        %918 = vmatprep.subr.bf16.mxu0 0
        %919 = vmatpush1.bf16.msra.mxu0 0
        %920 = vmatprep.subr.bf16.mxu0 0
        %921 = vmatpush1.bf16.msra.mxu0 0
        %922 = vmatprep.subr.bf16.mxu0 0
        %923 = vmatpush1.bf16.msra.mxu0 0
        %924 = vmatprep.subr.bf16.mxu0 0
        %925 = vmatpush1.bf16.msra.mxu0 0
        %926 = vmatprep.subr.bf16.mxu0 0
        %927 = vmatpush1.bf16.msra.mxu0 0
        %928 = vmatprep.subr.bf16.mxu0 0
        %929 = vmatpush1.bf16.msra.mxu0 0
        %930 = vmatprep.mubr.bf16.mxu0 0
        %931 = vmatmul.mubr.bf16.gmra.mrb[0].mxu0 %v893
        %v932 = vpop.f32.mrb[0].mxu0
        %v933 = vadd.f32 0.0, %v932
        %v934 = vpop.f32.mrb[0].mxu0
        %v935 = vpop.f32.mrb[0].mxu0
        %v936 = vpop.f32.mrb[0].mxu0
        %937 = vdwg.mxu0
        %939 = vrot.lane.b32.xlu0 %v649, 16
        %v940 = vpop.permute.xlu0 %939
        %943 = vrot.lane.b32.xlu0 %v791, 32
        %v944 = vpop.permute.xlu0 %943
        %947 = vrot.lane.b32.xlu0 %v933, 48
        %v948 = vpop.permute.xlu0 %947
        %v950 = vsel %vm375, %v506, %v940
        %vm951 = vcmask 261120
        %v952 = vsel %vm951, %v950, %v944
        %vm953 = vcmask 392192
        %v954 = vsel %vm953, %v952, %v948
        %v955 = vpack.c.bf16 %v954, %v954
        %v956 = vld [vmem:[%s4] sm:$0xf]
        %v957 = vld [vmem:[%s4 + $0x4] sm:$0xf]
        %v958 = vld [vmem:[%s4 + $0x8] sm:$0xf]
        %v959 = vld [vmem:[%s4 + $0xc] sm:$0xf]
        %v960 = vld [vmem:[%s4 + $0x10] sm:$0xf]
        %v961 = vld [vmem:[%s4 + $0x14] sm:$0xf]
        %v962 = vld [vmem:[%s4 + $0x18] sm:$0xf]
        %v963 = vld [vmem:[%s4 + $0x1c] sm:$0xf]
        %v964 = vld [vmem:[%s5] sm:$0x1]
        %v973 = vunpack.c.l.b16 %v956
        %v974 = vunpack.c.l.b16 %v957
        %v975 = vunpack.c.l.b16 %v958
        %v976 = vunpack.c.l.b16 %v959
        %v977 = vunpack.c.l.b16 %v960
        %v978 = vunpack.c.l.b16 %v961
        %v979 = vunpack.c.l.b16 %v962
        %v980 = vunpack.c.l.b16 %v963
        %v981 = vpack.c.b16 %v974, %v973
        %v982 = vpack.c.b16 %v976, %v975
        %v983 = vpack.c.b16 %v978, %v977
        %v984 = vpack.c.b16 %v980, %v979
        %v990 = vsel %vm298, %v955, 0
        %992 = vmatprep.subr.bf16.mxu0 0
        %993 = vmatpush1.bf16.msra.mxu0 %v981
        %994 = vmatprep.subr.bf16.mxu0 0
        %995 = vmatpush1.bf16.msra.mxu0 %v982
        %996 = vmatprep.subr.bf16.mxu0 0
        %997 = vmatpush1.bf16.msra.mxu0 %v983
        %998 = vmatprep.subr.bf16.mxu0 0
        %999 = vmatpush1.bf16.msra.mxu0 %v984
        %1000 = vmatprep.subr.bf16.mxu0 0
        %1001 = vmatpush1.bf16.msra.mxu0 0
        %1002 = vmatprep.subr.bf16.mxu0 0
        %1003 = vmatpush1.bf16.msra.mxu0 0
        %1004 = vmatprep.subr.bf16.mxu0 0
        %1005 = vmatpush1.bf16.msra.mxu0 0
        %1006 = vmatprep.subr.bf16.mxu0 0
        %1007 = vmatpush1.bf16.msra.mxu0 0
        %1008 = vmatprep.subr.bf16.mxu0 0
        %1009 = vmatpush1.bf16.msra.mxu0 0
        %1010 = vmatprep.subr.bf16.mxu0 0
        %1011 = vmatpush1.bf16.msra.mxu0 0
        %1012 = vmatprep.subr.bf16.mxu0 0
        %1013 = vmatpush1.bf16.msra.mxu0 0
        %1014 = vmatprep.subr.bf16.mxu0 0
        %1015 = vmatpush1.bf16.msra.mxu0 0
        %1016 = vmatprep.subr.bf16.mxu0 0
        %1017 = vmatpush1.bf16.msra.mxu0 0
        %1018 = vmatprep.subr.bf16.mxu0 0
        %1019 = vmatpush1.bf16.msra.mxu0 0
        %1020 = vmatprep.subr.bf16.mxu0 0
        %1021 = vmatpush1.bf16.msra.mxu0 0
        %1022 = vmatprep.subr.bf16.mxu0 0
        %1023 = vmatpush1.bf16.msra.mxu0 0
        %1024 = vmatprep.mubr.bf16.mxu0 0
        %1025 = vmatmul.mubr.bf16.gmra.mrb[0].mxu0 %v990
        %v1026 = vpop.f32.mrb[0].mxu0
        %v1027 = vadd.f32 %v964, %v1026
        %v1028 = vpop.f32.mrb[0].mxu0
        %v1029 = vpop.f32.mrb[0].mxu0
        %v1030 = vpop.f32.mrb[0].mxu0
        %1031 = vdwg.mxu0
        %vm1032 = vcmask 253952
        %1033 = vst.msk [vmem:[%s254] sm:$0x1] %vm1032, %v1027
        %s1034 = sand.u32 %s164, 1
        %s1035 = scalar_lea.sflag [#allocation3], %s1034
        %s1036 = sand.u32 %s164, 1
        %s1037 = scalar_lea.vmem [#allocation2], %s1036
        // Predicated region
        $region45: #{attention_pool2d.3} parent=43 // pred_check
          %p1038 = pneg %p174
        $region46: #{attention_pool2d.3} parent=43 // pred_check_branch
          %1040 = sbr.rel (%p1038) target = $region48
        $region47: #{attention_pool2d.3} parent=43 // pred_region
          %s1042 = ssub.s32 16, 16
          %1043 = vsyncadd %s1035, %s1042
          %s1044 = smul.addr %s20, 16
          %s1045 = scalar_lea.hbm %s6, %s1044
          %s1047 = sshll.u32 %s1037, 4
          %s1048 = int_to_ptr.vmem [resolvable:$true] %s1047
          %1050 = dma.vmem_to_hbm [thread:$0]  %s1048, 16, %s1045, %s1035
        $region48: #{attention_pool2d.3} parent=43 // pred_fallthru
          _
      $region44: #{attention_pool2d.3} parent=5 // pred_fallthru
        _
      %p1051 = scmp.le.s32.totalorder 2, %s15
      // Predicated region
      $region49: #{attention_pool2d.3} parent=5 // pred_check
        %p1052 = pneg %p1051
      $region50: #{attention_pool2d.3} parent=5 // pred_check_branch
        %1054 = sbr.rel (%p1052) target = $region52
      $region51: #{attention_pool2d.3} parent=5 // pred_region
        %s1055 = ssub.s32 %s15, 2
        // Predicated region
        $region53: #{attention_pool2d.3} parent=51 // pred_check
          %p1056 = pneg %p180
        $region54: #{attention_pool2d.3} parent=51 // pred_check_branch
          %1058 = sbr.rel (%p1056) target = $region56
        $region55: #{attention_pool2d.3} parent=51 // pred_region
          %s1059 = sand.u32 %s165, 1
          %s1060 = scalar_lea.sflag [#allocation3], %s1059
          %s1061 = sand.u32 %s165, 1
          %s1062 = scalar_lea.vmem [#allocation2], %s1061
          %1063 = dma.done %s1060, 16
        $region56: #{attention_pool2d.3} parent=51 // pred_fallthru
          _
      $region52: #{attention_pool2d.3} parent=5 // pred_fallthru
        _
    $region6: #{attention_pool2d.3} parent=1 // loop_footer
      %s19 = sadd.s32 1, %s15
    $region7: #{attention_pool2d.3} parent=1 // loop_footer_branch
      %14 = sbr.rel target = $region3
    $region8: #{attention_pool2d.3} parent=1 // loop_exit
      _
    %1064 = vsyncpa [#allocation3], 1
    %s1065 = scalar_lea.sflag [#allocation3], 1
    %1066 = vsyncpa %s1065, 1

</llo_original>
